<compile_context>
chip_gen: v7x
topology: tpu7x:2x2x1
jax: 0.10.0
libtpu: 0.0.40
codegen_flags: <defaults>
</compile_context>

<pallas_src>
import functools

import jax
import jax.numpy as jnp
from jax.experimental import pallas as pl
from jax.experimental.pallas import tpu as pltpu


def _silu(v):
    # v * sigmoid(v) == 0.5 * v * (1 + tanh(0.5 * v)); single EUP push, no
    # overflow for very negative pre-activations.
    return 0.5 * v * (1.0 + jnp.tanh(0.5 * v))


# ---------------------------------------------------------------------------
# Pallas kernel: one (batch block, H tile) per grid step.
# x_ref holds the full H-padded image of this batch block; the kernel slices
# its own (th + 2)-row halo window, runs cv1 as a 1x1 matmul, builds a 9-tap
# im2col matrix and runs cv2 as a single K = 9*c_ matmul.
# ---------------------------------------------------------------------------
def _bottleneck_kernel(x_ref, w1_ref, b1_ref, w2_ref, b2_ref, o_ref, *, add, H):
    nb, th, W, c2 = o_ref.shape
    C1 = x_ref.shape[3]
    c_ = w1_ref.shape[1]
    R = th + 2                      # rows needed for this tile (1-row halo)
    Mo = nb * th * W
    bf16 = jnp.bfloat16

    h = pl.program_id(1)
    row0 = pl.multiple_of(h * th, th)            # start row in padded coords
    xs = x_ref[:, pl.ds(row0, R), :, :]          # (nb, R, W, C1), I/O dtype

    # ---- cv1: 1x1 conv (BN folded) + SiLU --------------------------------
    y = jnp.dot(xs.reshape(nb * R * W, C1).astype(bf16), w1_ref[...],
                preferred_element_type=jnp.float32) + b1_ref[...]
    t = _silu(y).reshape(nb, R, W, c_)
    # Rows that correspond to cv2's zero padding (padded rows 0 and H+1) must
    # be zero in t (the wrapper zero-pads x, but silu(b1) != 0 on those rows).
    prow = row0 + jax.lax.broadcasted_iota(jnp.int32, (R, 1), 0).reshape(1, R, 1, 1)
    t = jnp.where((prow >= 1) & (prow <= H), t, 0.0).astype(bf16)

    # ---- cv2: 3x3 SAME conv as one im2col matmul (K = 9*c_) --------------
    zc = jnp.zeros((nb, R, 1, c_), bf16)
    cols = (jnp.concatenate([zc, t[:, :, :W - 1, :]], axis=2),   # value at w-1
            t,                                                   # value at w
            jnp.concatenate([t[:, :, 1:, :], zc], axis=2))       # value at w+1
    # Tap (ky, kx) for local output row j is cols[kx][:, j+ky]; concatenated
    # along the lane axis in (ky*3 + kx) order to match the packed w2 layout.
    patches = jnp.concatenate(
        [cols[kx][:, ky:ky + th] for ky in range(3) for kx in range(3)],
        axis=-1)                                                 # (nb, th, W, 9*c_)
    z = jnp.dot(patches.reshape(Mo, 9 * c_), w2_ref[...],
                preferred_element_type=jnp.float32) + b2_ref[...]
    z = _silu(z)

    if add:
        z = z + xs[:, 1:1 + th].astype(jnp.float32).reshape(Mo, c2)
    o_ref[...] = z.reshape(nb, th, W, c2).astype(o_ref.dtype)


# ---------------------------------------------------------------------------
# Wrapper glue: tiling heuristics, BlockSpecs, grid, VMEM budget.
# ---------------------------------------------------------------------------
def _const_spec(a):
    """Grid-invariant (weight/bias) spec, single-buffered when supported."""
    nd = a.ndim
    idx = lambda b, h, _nd=nd: (0,) * _nd
    try:
        return pl.BlockSpec(a.shape, idx, pipeline_mode=pl.Buffered(1))
    except TypeError:                       # older BlockSpec without the kwarg
        return pl.BlockSpec(a.shape, idx)


def _choose_tiles(N, H, W, c1, c_, c2, io_bytes):
    """Pick (nb, th): batch fold and output rows per grid step."""
    tile_budget = 16 << 20       # th-dependent intermediates + out block
    total_budget = 44 << 20      # incl. resident padded-x block (2x buffered)

    def x_bytes(nb):
        return 2 * nb * (H + 2) * W * c1 * io_bytes

    def tile_bytes(nb, th):
        r_in, r_out = nb * (th + 2) * W, nb * th * W
        return (4 * r_in * c_ * 2            # t + 3 column-shifted copies (bf16)
                + r_in * c_ * 4              # f32 cv1 result
                + r_out * 9 * c_ * 2         # im2col patches (bf16)
                + r_out * c2 * 4             # f32 cv2 result
                + 2 * r_out * c2 * io_bytes)  # out block (double-buffered)

    divisors = [d for d in range(1, H + 1) if H % d == 0]
    ok = [d for d in divisors
          if tile_bytes(1, d) <= tile_budget
          and x_bytes(1) + tile_bytes(1, d) <= total_budget]
    th = max(ok) if ok else min(divisors)

    nb = 1
    while (2 * nb <= N and N % (2 * nb) == 0 and nb * th * W < 2048
           and x_bytes(2 * nb) + tile_bytes(2 * nb, th) <= total_budget):
        nb *= 2

    # v7x has 2 TensorCores: keep >= 2 grid steps whenever the problem allows.
    if (N // nb) * (H // th) < 2:
        if nb > 1:
            nb //= 2
        else:
            smaller = [d for d in divisors if d < th]
            if smaller:
                th = max(smaller)
    return nb, th


def _vmem_limit(est_bytes):
    cap = 64 << 20
    try:
        info = pltpu.get_tpu_info()
        cap = int(getattr(info, "vmem_capacity_bytes", cap)) * 3 // 4
    except Exception:
        pass
    return int(min(max(32 << 20, int(est_bytes) * 5 // 4), max(cap, 32 << 20)))


def bottleneck_forward_nhwc(x_nhwc, params, *, shortcut=True,
                            batch_block=None, h_block=None):
    """Bottleneck forward on NHWC activations (core Pallas entry point).

    params = (w1 (c1,c_), b1 (1,c_), w2_packed (9*c_,c2), b2 (1,c2)); BN folded.
    The I/O dtype follows x_nhwc (pass bf16 to halve HBM traffic)."""
    w1, b1, w2p, b2 = params
    N, H, W, C1 = x_nhwc.shape
    c_ = w1.shape[1]
    c2 = w2p.shape[1]
    add = bool(shortcut) and (C1 == c2)
    dtype = x_nhwc.dtype
    io_bytes = jnp.dtype(dtype).itemsize

    nb, th = _choose_tiles(N, H, W, C1, c_, c2, io_bytes)
    if batch_block is not None:
        nb = batch_block
    if h_block is not None:
        th = h_block
    assert N % nb == 0 and H % th == 0, (N, nb, H, th)

    # Zero-pad H by 1 on each side (cv2 SAME padding along H; W handled
    # in-kernel via column shifts).  Pad rows of t are re-zeroed in-kernel.
    x_pad = jnp.pad(x_nhwc, ((0, 0), (1, 1), (0, 0), (0, 0)))

    w1_b = w1.astype(jnp.bfloat16)
    w2_b = w2p.astype(jnp.bfloat16)
    b1_f = b1.astype(jnp.float32)
    b2_f = b2.astype(jnp.float32)

    r_in, r_out = nb * (th + 2) * W, nb * th * W
    est = (2 * nb * (H + 2) * W * C1 * io_bytes
           + 4 * r_in * c_ * 2 + r_in * c_ * 4
           + r_out * 9 * c_ * 2 + r_out * c2 * 4
           + 2 * r_out * c2 * io_bytes
           + 2 * (w1_b.size + w2_b.size) + 4 * (b1_f.size + b2_f.size))

    kernel = functools.partial(_bottleneck_kernel, add=add, H=H)
    return pl.pallas_call(
        kernel,
        out_shape=jax.ShapeDtypeStruct((N, H, W, c2), dtype),
        grid=(N // nb, H // th),
        in_specs=[pl.BlockSpec((nb, H + 2, W, C1), lambda b, h: (b, 0, 0, 0)),
                  _const_spec(w1_b), _const_spec(b1_f),
                  _const_spec(w2_b), _const_spec(b2_f)],
        out_specs=pl.BlockSpec((nb, th, W, c2), lambda b, h: (b, h, 0, 0)),
        compiler_params=pltpu.CompilerParams(
            dimension_semantics=("parallel", "parallel"),
            vmem_limit_bytes=_vmem_limit(est)),
    )(x_pad, w1_b, b1_f, w2_b, b2_f)


def bottleneck_forward(x_nchw, params, *, shortcut=True,
                       batch_block=None, h_block=None):
    """NCHW (PyTorch-layout) wrapper.  In a full network keep activations NHWC
    end-to-end and call bottleneck_forward_nhwc directly."""
    x = jnp.transpose(x_nchw, (0, 2, 3, 1))
    out = bottleneck_forward_nhwc(x, params, shortcut=shortcut,
                                  batch_block=batch_block, h_block=h_block)
    return jnp.transpose(out, (0, 3, 1, 2))


# ---------------------------------------------------------------------------
# Deterministic parameter init (Conv weights + BatchNorm, BN folded).
# w2 is packed im2col-style: K index = (ky*3 + kx)*c_ + ci.
# ---------------------------------------------------------------------------
def _fold_bn(w, gamma, beta, mean, var, eps=1e-5):
    scale = gamma / jnp.sqrt(var + eps)
    return w * scale, beta - mean * scale


def _make_conv_bn(key, cin, cout, k):
    kw, kg, kb, km, kv = jax.random.split(key, 5)
    if k == 1:
        w = jax.random.normal(kw, (cin, cout), jnp.float32) / jnp.sqrt(cin)
    else:
        w = jax.random.normal(kw, (k, k, cin, cout), jnp.float32) / jnp.sqrt(cin * k * k)
    gamma = 1.0 + 0.1 * jax.random.normal(kg, (cout,), jnp.float32)
    beta = 0.1 * jax.random.normal(kb, (cout,), jnp.float32)
    mean = 0.1 * jax.random.normal(km, (cout,), jnp.float32)
    var = jnp.abs(jax.random.normal(kv, (cout,), jnp.float32)) + 0.5
    return _fold_bn(w, gamma, beta, mean, var)


def init_bottleneck_params(key, c1, c2, e=0.5):
    c_ = int(c2 * e)
    k1, k2 = jax.random.split(key)
    w1, b1 = _make_conv_bn(k1, c1, c_, 1)           # (c1, c_), (c_,)
    w2, b2 = _make_conv_bn(k2, c_, c2, 3)           # HWIO (3, 3, c_, c2), (c2,)
    return (w1, b1.reshape(1, c_), w2.reshape(9 * c_, c2), b2.reshape(1, c2))


# ---------------------------------------------------------------------------
# Pure-JAX reference (same folded-BN math).  mxu_dtype=float32 -> f32/HIGHEST
# reference; mxu_dtype=bfloat16 -> matched bf16-operand reference for a tight
# tap-correctness check.
# ---------------------------------------------------------------------------
def bottleneck_reference(x_nchw, params, *, shortcut=True, mxu_dtype=jnp.float32):
    w1, b1, w2p, b2 = params
    c_, c2 = w1.shape[1], w2p.shape[1]
    add = bool(shortcut) and (x_nchw.shape[1] == c2)
    prec = (jax.lax.Precision.HIGHEST if mxu_dtype == jnp.float32
            else jax.lax.Precision.DEFAULT)
    x = jnp.transpose(x_nchw, (0, 2, 3, 1)).astype(jnp.float32)
    y = jnp.einsum('nhwc,cd->nhwd', x.astype(mxu_dtype), w1.astype(mxu_dtype),
                   precision=prec, preferred_element_type=jnp.float32) + b1
    y = y * jax.nn.sigmoid(y)
    wk = w2p.reshape(3, 3, c_, c2)
    z = jax.lax.conv_general_dilated(
        y.astype(mxu_dtype), wk.astype(mxu_dtype), (1, 1), 'SAME',
        dimension_numbers=('NHWC', 'HWIO', 'NHWC'),
        precision=prec, preferred_element_type=jnp.float32) + b2
    z = z * jax.nn.sigmoid(z)
    out = x + z if add else z
    return jnp.transpose(out, (0, 3, 1, 2))


def _check(name, got, want, max_tol, mean_tol):
    got = jnp.asarray(got, jnp.float32)
    want = jnp.asarray(want, jnp.float32)
    max_err = float(jnp.max(jnp.abs(got - want)))
    mean_err = float(jnp.mean(jnp.abs(got - want)))
    if not (max_err < max_tol and mean_err < mean_tol):
        raise AssertionError(
            f"{name}: max_err={max_err} mean_err={mean_err} "
            f"(tol {max_tol}/{mean_tol})")


if __name__ == "__main__":
    key = jax.random.PRNGKey(0)
    kx, kp, kq = jax.random.split(key, 3)

    # Case 1: residual-add path, automatic tiling (grid over batch).
    N, C1, C2, H, W = 2, 16, 16, 16, 16          # c_ = 8, shortcut add active
    x = jax.random.normal(kx, (N, C1, H, W), jnp.float32)
    params = init_bottleneck_params(kp, C1, C2, e=0.5)

    y = jax.block_until_ready(bottleneck_forward(x, params, shortcut=True))
    assert y.shape == (N, C2, H, W), y.shape
    y_f32 = bottleneck_reference(x, params, shortcut=True, mxu_dtype=jnp.float32)
    y_b16 = bottleneck_reference(x, params, shortcut=True, mxu_dtype=jnp.bfloat16)
    _check("case1 vs f32 ref", y, y_f32, 1e-1, 1e-2)
    _check("case1 vs bf16 ref", y, y_b16, 5e-3, 5e-4)

    # Case 2: same inputs with forced H tiling (exercises the halo logic).
    y2 = jax.block_until_ready(
        bottleneck_forward(x, params, shortcut=True, batch_block=1, h_block=8))
    _check("case2 vs bf16 ref", y2, y_b16, 5e-3, 5e-4)

    # Case 3: bf16 activation path, no shortcut (c1 != c2).
    N3, C1b, C2b = 1, 8, 16
    xb = jax.random.normal(kq, (N3, C1b, H, W), jnp.float32)
    params_b = init_bottleneck_params(jax.random.fold_in(kp, 1), C1b, C2b, e=0.5)
    yb = jax.block_until_ready(
        bottleneck_forward(xb.astype(jnp.bfloat16), params_b,
                           shortcut=True, h_block=8))
    assert yb.shape == (N3, C2b, H, W) and yb.dtype == jnp.bfloat16
    yb_ref = bottleneck_reference(xb.astype(jnp.bfloat16).astype(jnp.float32),
                                  params_b, shortcut=True, mxu_dtype=jnp.bfloat16)
    _check("case3 vs bf16 ref", yb, yb_ref, 5e-2, 5e-3)

    print("KERNEL_OK")
</pallas_src>

<mosaic_0001>
module attributes {stable_mosaic.version = 11 : i64} {
  func.func @_bottleneck_kernel(%arg0: i32, %arg1: i32, %arg2: memref<1x18x16x16xf32, #tpu.memory_space<vmem>>, %arg3: memref<16x8xbf16, #tpu.memory_space<vmem>>, %arg4: memref<1x8xf32, #tpu.memory_space<vmem>>, %arg5: memref<72x16xbf16, #tpu.memory_space<vmem>>, %arg6: memref<1x16xf32, #tpu.memory_space<vmem>>, %arg7: memref<1x16x16x16xf32, #tpu.memory_space<vmem>>) attributes {dimension_semantics = [#tpu.dimension_semantics<parallel>, #tpu.dimension_semantics<parallel>], iteration_bounds = array<i64: 2, 1>, scalar_prefetch = 0 : i64, scratch_operands = 0 : i64, tpu.core_type = #tpu.core_type<tc>, window_params = [{transform_indices = @transform_0, window_bounds = array<i64: 1, 18, 16, 16>}, {pipeline_mode = #tpu.pipeline_mode<synchronous>, transform_indices = @transform_1, window_bounds = array<i64: 16, 8>}, {pipeline_mode = #tpu.pipeline_mode<synchronous>, transform_indices = @transform_2, window_bounds = array<i64: 1, 8>}, {pipeline_mode = #tpu.pipeline_mode<synchronous>, transform_indices = @transform_3, window_bounds = array<i64: 72, 16>}, {pipeline_mode = #tpu.pipeline_mode<synchronous>, transform_indices = @transform_4, window_bounds = array<i64: 1, 16>}, {transform_indices = @transform_5, window_bounds = array<i64: 1, 16, 16, 16>}]} {
    %c16_i32 = arith.constant 16 : i32
    %0 = arith.muli %arg1, %c16_i32 : i32
    %1 = tpu.assume_multiple %0, 16 : i32
    %c0 = arith.constant 0 : index
    %2 = arith.index_cast %1 : i32 to index
    %c0_0 = arith.constant 0 : index
    %c0_1 = arith.constant 0 : index
    %3 = vector.load %arg2[%c0, %2, %c0_0, %c0_1] : memref<1x18x16x16xf32, #tpu.memory_space<vmem>>, vector<1x18x16x16xf32>
    %4 = vector.shape_cast %3 : vector<1x18x16x16xf32> to vector<288x16xf32>
    %5 = arith.truncf %4 : vector<288x16xf32> to vector<288x16xbf16>
    %c0_2 = arith.constant 0 : index
    %c0_3 = arith.constant 0 : index
    %6 = vector.load %arg3[%c0_2, %c0_3] : memref<16x8xbf16, #tpu.memory_space<vmem>>, vector<16x8xbf16>
    %cst = arith.constant dense<0.000000e+00> : vector<288x8xf32>
    %7 = tpu.matmul %5, %6, %cst {dimension_numbers = #tpu.dot_dimension_numbers<[1], [0], [0], [1], [0, 0, 1, 1], [], []>} : vector<288x16xbf16>, vector<16x8xbf16>, vector<288x8xf32> -> vector<288x8xf32>
    %c0_4 = arith.constant 0 : index
    %c0_5 = arith.constant 0 : index
    %8 = vector.load %arg4[%c0_4, %c0_5] : memref<1x8xf32, #tpu.memory_space<vmem>>, vector<1x8xf32>
    %9 = vector.broadcast %8 : vector<1x8xf32> to vector<288x8xf32>
    %10 = arith.addf %7, %9 : vector<288x8xf32>
    %cst_6 = arith.constant 5.000000e-01 : f32
    %11 = vector.broadcast %cst_6 : f32 to vector<288x8xf32>
    %12 = arith.mulf %11, %10 : vector<288x8xf32>
    %cst_7 = arith.constant 5.000000e-01 : f32
    %13 = vector.broadcast %cst_7 : f32 to vector<288x8xf32>
    %14 = arith.mulf %13, %10 : vector<288x8xf32>
    %15 = math.tanh %14 : vector<288x8xf32>
    %cst_8 = arith.constant 1.000000e+00 : f32
    %16 = vector.broadcast %cst_8 : f32 to vector<288x8xf32>
    %17 = arith.addf %16, %15 : vector<288x8xf32>
    %18 = arith.mulf %12, %17 : vector<288x8xf32>
    %19 = vector.shape_cast %18 : vector<288x8xf32> to vector<1x18x16x8xf32>
    %20 = tpu.iota {dimensions = array<i32: 0>} : vector<18x1xi32>
    %21 = vector.shape_cast %20 : vector<18x1xi32> to vector<1x18x1x1xi32>
    %22 = vector.broadcast %1 : i32 to vector<1x18x1x1xi32>
    %23 = arith.addi %22, %21 : vector<1x18x1x1xi32>
    %c1_i32 = arith.constant 1 : i32
    %24 = vector.broadcast %c1_i32 : i32 to vector<1x18x1x1xi32>
    %25 = arith.cmpi sge, %23, %24 : vector<1x18x1x1xi32>
    %c16_i32_9 = arith.constant 16 : i32
    %26 = vector.broadcast %c16_i32_9 : i32 to vector<1x18x1x1xi32>
    %27 = arith.cmpi sle, %23, %26 : vector<1x18x1x1xi32>
    %28 = arith.andi %25, %27 : vector<1x18x1x1xi1>
    %cst_10 = arith.constant 0.000000e+00 : f32
    %29 = vector.shape_cast %28 : vector<1x18x1x1xi1> to vector<1x18x1x1xi1>
    %30 = vector.broadcast %29 : vector<1x18x1x1xi1> to vector<1x18x16x8xi1>
    %31 = vector.broadcast %cst_10 : f32 to vector<1x18x16x8xf32>
    %32 = arith.select %30, %19, %31 : vector<1x18x16x8xi1>, vector<1x18x16x8xf32>
    %33 = arith.truncf %32 : vector<1x18x16x8xf32> to vector<1x18x16x8xbf16>
    %cst_11 = arith.constant 0.000000e+00 : bf16
    %34 = vector.broadcast %cst_11 : bf16 to vector<1x18x1x8xbf16>
    %35 = vector.extract_strided_slice %33 {offsets = [0, 0, 0, 0], sizes = [1, 18, 15, 8], strides = [1, 1, 1, 1]} : vector<1x18x16x8xbf16> to vector<1x18x15x8xbf16>
    %36 = tpu.concatenate %34, %35 in 2 : vector<1x18x1x8xbf16>, vector<1x18x15x8xbf16> -> vector<1x18x16x8xbf16>
    %37 = vector.extract_strided_slice %33 {offsets = [0, 0, 1, 0], sizes = [1, 18, 15, 8], strides = [1, 1, 1, 1]} : vector<1x18x16x8xbf16> to vector<1x18x15x8xbf16>
    %38 = tpu.concatenate %37, %34 in 2 : vector<1x18x15x8xbf16>, vector<1x18x1x8xbf16> -> vector<1x18x16x8xbf16>
    %39 = vector.extract_strided_slice %36 {offsets = [0, 0, 0, 0], sizes = [1, 16, 16, 8], strides = [1, 1, 1, 1]} : vector<1x18x16x8xbf16> to vector<1x16x16x8xbf16>
    %40 = vector.extract_strided_slice %33 {offsets = [0, 0, 0, 0], sizes = [1, 16, 16, 8], strides = [1, 1, 1, 1]} : vector<1x18x16x8xbf16> to vector<1x16x16x8xbf16>
    %41 = vector.extract_strided_slice %38 {offsets = [0, 0, 0, 0], sizes = [1, 16, 16, 8], strides = [1, 1, 1, 1]} : vector<1x18x16x8xbf16> to vector<1x16x16x8xbf16>
    %42 = vector.extract_strided_slice %36 {offsets = [0, 1, 0, 0], sizes = [1, 16, 16, 8], strides = [1, 1, 1, 1]} : vector<1x18x16x8xbf16> to vector<1x16x16x8xbf16>
    %43 = vector.extract_strided_slice %33 {offsets = [0, 1, 0, 0], sizes = [1, 16, 16, 8], strides = [1, 1, 1, 1]} : vector<1x18x16x8xbf16> to vector<1x16x16x8xbf16>
    %44 = vector.extract_strided_slice %38 {offsets = [0, 1, 0, 0], sizes = [1, 16, 16, 8], strides = [1, 1, 1, 1]} : vector<1x18x16x8xbf16> to vector<1x16x16x8xbf16>
    %45 = vector.extract_strided_slice %36 {offsets = [0, 2, 0, 0], sizes = [1, 16, 16, 8], strides = [1, 1, 1, 1]} : vector<1x18x16x8xbf16> to vector<1x16x16x8xbf16>
    %46 = vector.extract_strided_slice %33 {offsets = [0, 2, 0, 0], sizes = [1, 16, 16, 8], strides = [1, 1, 1, 1]} : vector<1x18x16x8xbf16> to vector<1x16x16x8xbf16>
    %47 = vector.extract_strided_slice %38 {offsets = [0, 2, 0, 0], sizes = [1, 16, 16, 8], strides = [1, 1, 1, 1]} : vector<1x18x16x8xbf16> to vector<1x16x16x8xbf16>
    %48 = tpu.concatenate %39, %40, %41, %42, %43, %44, %45, %46, %47 in 3 : vector<1x16x16x8xbf16>, vector<1x16x16x8xbf16>, vector<1x16x16x8xbf16>, vector<1x16x16x8xbf16>, vector<1x16x16x8xbf16>, vector<1x16x16x8xbf16>, vector<1x16x16x8xbf16>, vector<1x16x16x8xbf16>, vector<1x16x16x8xbf16> -> vector<1x16x16x72xbf16>
    %49 = vector.shape_cast %48 : vector<1x16x16x72xbf16> to vector<256x72xbf16>
    %c0_12 = arith.constant 0 : index
    %c0_13 = arith.constant 0 : index
    %50 = vector.load %arg5[%c0_12, %c0_13] : memref<72x16xbf16, #tpu.memory_space<vmem>>, vector<72x16xbf16>
    %cst_14 = arith.constant dense<0.000000e+00> : vector<256x16xf32>
    %51 = tpu.matmul %49, %50, %cst_14 {dimension_numbers = #tpu.dot_dimension_numbers<[1], [0], [0], [1], [0, 0, 1, 1], [], []>} : vector<256x72xbf16>, vector<72x16xbf16>, vector<256x16xf32> -> vector<256x16xf32>
    %c0_15 = arith.constant 0 : index
    %c0_16 = arith.constant 0 : index
    %52 = vector.load %arg6[%c0_15, %c0_16] : memref<1x16xf32, #tpu.memory_space<vmem>>, vector<1x16xf32>
    %53 = vector.broadcast %52 : vector<1x16xf32> to vector<256x16xf32>
    %54 = arith.addf %51, %53 : vector<256x16xf32>
    %cst_17 = arith.constant 5.000000e-01 : f32
    %55 = vector.broadcast %cst_17 : f32 to vector<256x16xf32>
    %56 = arith.mulf %55, %54 : vector<256x16xf32>
    %cst_18 = arith.constant 5.000000e-01 : f32
    %57 = vector.broadcast %cst_18 : f32 to vector<256x16xf32>
    %58 = arith.mulf %57, %54 : vector<256x16xf32>
    %59 = math.tanh %58 : vector<256x16xf32>
    %cst_19 = arith.constant 1.000000e+00 : f32
    %60 = vector.broadcast %cst_19 : f32 to vector<256x16xf32>
    %61 = arith.addf %60, %59 : vector<256x16xf32>
    %62 = arith.mulf %56, %61 : vector<256x16xf32>
    %63 = vector.extract_strided_slice %3 {offsets = [0, 1, 0, 0], sizes = [1, 16, 16, 16], strides = [1, 1, 1, 1]} : vector<1x18x16x16xf32> to vector<1x16x16x16xf32>
    %64 = vector.shape_cast %63 : vector<1x16x16x16xf32> to vector<256x16xf32>
    %65 = arith.addf %62, %64 : vector<256x16xf32>
    %66 = vector.shape_cast %65 : vector<256x16xf32> to vector<1x16x16x16xf32>
    %c0_20 = arith.constant 0 : index
    %c0_21 = arith.constant 0 : index
    %c0_22 = arith.constant 0 : index
    %c0_23 = arith.constant 0 : index
    %67 = vector.load %arg7[%c0_20, %c0_21, %c0_22, %c0_23] : memref<1x16x16x16xf32, #tpu.memory_space<vmem>>, vector<1x16x16x16xf32>
    tpu.vector_store %arg7[%c0_20, %c0_21, %c0_22, %c0_23], %66 {strides = array<i32>} : memref<1x16x16x16xf32, #tpu.memory_space<vmem>>, vector<1x16x16x16xf32>,
    return
  }
  func.func @transform_0(%arg0: i32, %arg1: i32) -> (i32, i32, i32, i32) {
    %c0_i32 = arith.constant 0 : i32
    %c0_i32_0 = arith.constant 0 : i32
    %c0_i32_1 = arith.constant 0 : i32
    %c0_i32_2 = arith.constant 0 : i32
    return %arg0, %c0_i32, %c0_i32_0, %c0_i32_1 : i32, i32, i32, i32
  }
  func.func @transform_1(%arg0: i32, %arg1: i32) -> (i32, i32) {
    %c0_i32 = arith.constant 0 : i32
    %c0_i32_0 = arith.constant 0 : i32
    %c0_i32_1 = arith.constant 0 : i32
    return %c0_i32, %c0_i32_0 : i32, i32
  }
  func.func @transform_2(%arg0: i32, %arg1: i32) -> (i32, i32) {
    %c0_i32 = arith.constant 0 : i32
    %c0_i32_0 = arith.constant 0 : i32
    %c0_i32_1 = arith.constant 0 : i32
    return %c0_i32, %c0_i32_0 : i32, i32
  }
  func.func @transform_3(%arg0: i32, %arg1: i32) -> (i32, i32) {
    %c0_i32 = arith.constant 0 : i32
    %c0_i32_0 = arith.constant 0 : i32
    %c0_i32_1 = arith.constant 0 : i32
    return %c0_i32, %c0_i32_0 : i32, i32
  }
  func.func @transform_4(%arg0: i32, %arg1: i32) -> (i32, i32) {
    %c0_i32 = arith.constant 0 : i32
    %c0_i32_0 = arith.constant 0 : i32
    %c0_i32_1 = arith.constant 0 : i32
    return %c0_i32, %c0_i32_0 : i32, i32
  }
  func.func @transform_5(%arg0: i32, %arg1: i32) -> (i32, i32, i32, i32) {
    %c0_i32 = arith.constant 0 : i32
    %c0_i32_0 = arith.constant 0 : i32
    %c0_i32_1 = arith.constant 0 : i32
    return %arg0, %arg1, %c0_i32, %c0_i32_0 : i32, i32, i32, i32
  }
}

</mosaic_0001>

<llo_original>
// kernel: tpu_custom_call.1
$region0: #{tpu_custom_call.1}
  #allocation0 [shape = 'u32[]', space=smem, size = 0x4, offset = 0x4, fixed_abs, tag = 'smem constant byte address 0x4 - core index']
  #allocation1 [shape = 'u32[144,128]{1,0:T(1,128)}', space=vmem, size = 0x12000, scoped, tag = 'internal scratch']
  %s0 = inlined_call_operand.vmem [shape: f32[2,18,16,16], index: 0, kind: input, shape index: {}]
  %s1 = inlined_call_operand.vmem [shape: bf16[16,8], index: 1, kind: input, shape index: {}]
  %s2 = inlined_call_operand.vmem [shape: f32[1,8], index: 2, kind: input, shape index: {}]
  %s3 = inlined_call_operand.vmem [shape: bf16[72,16], index: 3, kind: input, shape index: {}]
  %s4 = inlined_call_operand.vmem [shape: f32[1,16], index: 4, kind: input, shape index: {}]
  %s5 = inlined_call_operand.hbm [shape: f32[2,16,16,16], index: 5, kind: output, shape index: {}]
  %s6 = sld [smem:[#allocation0]]
  $region53: #{tpu_custom_call.1} parent=0
    _
  %s8 = ssub.s32 1, %s6
  %s9 = scalar_select 0, %s8, %s6
  $region1: #{tpu_custom_call.1} parent=0
    #allocation2 [shape = 'u8[262144]{0}', space=vmem, size = 0x40000, scoped, tag = 'output window, operand 0']
    #allocation3 [shape = 's32[2]{0}', space=sflag, size = 0x8, scoped, tag = 'scoped memory for tpu_custom_call.1']
    %10 = vsyncpa [#allocation3], 0
    %s11 = scalar_lea.sflag [#allocation3], 1
    %12 = vsyncpa %s11, 0
    loop: start=0, step=1, limit=4
    $region2: #{tpu_custom_call.1} parent=1 // loop_pre_header
      _
    $region3: #{tpu_custom_call.1} parent=1 // loop_header
      %s14 = sphi 0, %s18
      %p15 = scmp.ge.s32.totalorder %s14, 4
      %s21 = sphi 0, %s33
      %s22 = sphi 0, %s29
      %s23 = sphi 0, %s21
      %s24 = sphi 0, %s22
      %s25 = sphi 0, %s23
      %s26 = sphi 0, %s24
      %s36 = sphi 0, %s38
      %s39 = sphi 0, %s36
      %s40 = sphi 0, %s39
      %s56 = sphi 0, %s40
      %s60 = sphi 0, %s60
      %s62 = sphi 0, %s60
      %s63 = sphi 0, %s62
      %s77 = sphi 0, %s63
      %s81 = sphi 0, %s81
      %s83 = sphi 0, %s81
      %s84 = sphi 0, %s83
      %s98 = sphi 0, %s84
      %s102 = sphi 0, %s102
      %s104 = sphi 0, %s102
      %s105 = sphi 0, %s104
      %s119 = sphi 0, %s105
      %s123 = sphi 0, %s123
      %s125 = sphi 0, %s123
      %s126 = sphi 0, %s125
      %s140 = sphi 0, %s126
      %s148 = sphi 0, %s150
      %s151 = sphi 0, %s148
      %s152 = sphi 0, %s151
      %s168 = sphi 0, %s152
    $region4: #{tpu_custom_call.1} parent=1 // loop_header_branch
      %17 = sbr.rel (%p15) target = $region8
    $region5: #{tpu_custom_call.1} parent=1 // loop_body
      %s19 = ssub.s32 %s14, 1
      %s20 = ssub.s32 %s14, 2
      %s27 = sadd.s32 1, %s22
      %p28 = scmp.ge.s32.totalorder %s27, 1
      %s29 = scalar_select %p28, 0, %s27
      %s30 = sadd.s32 1, %s21
      %s31 = scalar_select %p28, %s30, %s21
      %p32 = scmp.ge.s32.totalorder %s31, 2
      %s33 = scalar_select %p32, 0, %s31
      %s34 = ssub.s32 %s21, %s33
      %p35 = scmp.eq.s32.totalorder %s34, 0
      %s37 = sadd.s32 %s36, 1
      %s38 = scalar_select %p35, %s36, %s37
      %p41 = pneg %p35
      %p42 = scmp.eq.s32.totalorder %s14, 1
      %p43 = por %p41, %p42
      %p44 = scmp.ne.s32.totalorder %s36, %s39
      %p45 = scmp.eq.s32.totalorder %s14, 0
      %p46 = por %p44, %p45
      %p47 = scmp.ne.s32.totalorder %s36, %s39
      %p48 = scmp.eq.s32.totalorder %s19, 1
      %p49 = por %p47, %p48
      %p50 = scmp.ne.s32.totalorder %s39, %s40
      %p51 = scmp.eq.s32.totalorder %s19, 0
      %p52 = por %p50, %p51
      %p53 = scmp.ne.s32.totalorder %s39, %s40
      %p54 = scmp.eq.s32.totalorder %s20, 1
      %p55 = por %p53, %p54
      %p57 = scmp.ne.s32.totalorder %s40, %s56
      %p58 = scmp.eq.s32.totalorder %s20, 0
      %p59 = por %p57, %p58
      %s61 = sadd.s32 %s60, 1
      %p64 = scmp.eq.s32.totalorder %s14, 1
      %p65 = scmp.ne.s32.totalorder %s60, %s62
      %p66 = scmp.eq.s32.totalorder %s14, 0
      %p67 = por %p65, %p66
      %p68 = scmp.ne.s32.totalorder %s60, %s62
      %p69 = scmp.eq.s32.totalorder %s19, 1
      %p70 = por %p68, %p69
      %p71 = scmp.ne.s32.totalorder %s62, %s63
      %p72 = scmp.eq.s32.totalorder %s19, 0
      %p73 = por %p71, %p72
      %p74 = scmp.ne.s32.totalorder %s62, %s63
      %p75 = scmp.eq.s32.totalorder %s20, 1
      %p76 = por %p74, %p75
      %p78 = scmp.ne.s32.totalorder %s63, %s77
      %p79 = scmp.eq.s32.totalorder %s20, 0
      %p80 = por %p78, %p79
      %s82 = sadd.s32 %s81, 1
      %p85 = scmp.eq.s32.totalorder %s14, 1
      %p86 = scmp.ne.s32.totalorder %s81, %s83
      %p87 = scmp.eq.s32.totalorder %s14, 0
      %p88 = por %p86, %p87
      %p89 = scmp.ne.s32.totalorder %s81, %s83
      %p90 = scmp.eq.s32.totalorder %s19, 1
      %p91 = por %p89, %p90
      %p92 = scmp.ne.s32.totalorder %s83, %s84
      %p93 = scmp.eq.s32.totalorder %s19, 0
      %p94 = por %p92, %p93
      %p95 = scmp.ne.s32.totalorder %s83, %s84
      %p96 = scmp.eq.s32.totalorder %s20, 1
      %p97 = por %p95, %p96
      %p99 = scmp.ne.s32.totalorder %s84, %s98
      %p100 = scmp.eq.s32.totalorder %s20, 0
      %p101 = por %p99, %p100
      %s103 = sadd.s32 %s102, 1
      %p106 = scmp.eq.s32.totalorder %s14, 1
      %p107 = scmp.ne.s32.totalorder %s102, %s104
      %p108 = scmp.eq.s32.totalorder %s14, 0
      %p109 = por %p107, %p108
      %p110 = scmp.ne.s32.totalorder %s102, %s104
      %p111 = scmp.eq.s32.totalorder %s19, 1
      %p112 = por %p110, %p111
      %p113 = scmp.ne.s32.totalorder %s104, %s105
      %p114 = scmp.eq.s32.totalorder %s19, 0
      %p115 = por %p113, %p114
      %p116 = scmp.ne.s32.totalorder %s104, %s105
      %p117 = scmp.eq.s32.totalorder %s20, 1
      %p118 = por %p116, %p117
      %p120 = scmp.ne.s32.totalorder %s105, %s119
      %p121 = scmp.eq.s32.totalorder %s20, 0
      %p122 = por %p120, %p121
      %s124 = sadd.s32 %s123, 1
      %p127 = scmp.eq.s32.totalorder %s14, 1
      %p128 = scmp.ne.s32.totalorder %s123, %s125
      %p129 = scmp.eq.s32.totalorder %s14, 0
      %p130 = por %p128, %p129
      %p131 = scmp.ne.s32.totalorder %s123, %s125
      %p132 = scmp.eq.s32.totalorder %s19, 1
      %p133 = por %p131, %p132
      %p134 = scmp.ne.s32.totalorder %s125, %s126
      %p135 = scmp.eq.s32.totalorder %s19, 0
      %p136 = por %p134, %p135
      %p137 = scmp.ne.s32.totalorder %s125, %s126
      %p138 = scmp.eq.s32.totalorder %s20, 1
      %p139 = por %p137, %p138
      %p141 = scmp.ne.s32.totalorder %s126, %s140
      %p142 = scmp.eq.s32.totalorder %s20, 0
      %p143 = por %p141, %p142
      %s144 = ssub.s32 %s21, %s33
      %s145 = ssub.s32 %s22, %s29
      %s146 = sor.u32 %s144, %s145
      %p147 = scmp.eq.s32.totalorder %s146, 0
      %s149 = sadd.s32 %s148, 1
      %s150 = scalar_select %p147, %s148, %s149
      %p153 = pneg %p147
      %p154 = scmp.eq.s32.totalorder %s14, 1
      %p155 = por %p153, %p154
      %p156 = scmp.ne.s32.totalorder %s148, %s151
      %p157 = scmp.eq.s32.totalorder %s14, 0
      %p158 = por %p156, %p157
      %p159 = scmp.ne.s32.totalorder %s148, %s151
      %p160 = scmp.eq.s32.totalorder %s19, 1
      %p161 = por %p159, %p160
      %p162 = scmp.ne.s32.totalorder %s151, %s152
      %p163 = scmp.eq.s32.totalorder %s19, 0
      %p164 = por %p162, %p163
      %p165 = scmp.ne.s32.totalorder %s151, %s152
      %p166 = scmp.eq.s32.totalorder %s20, 1
      %p167 = por %p165, %p166
      %p169 = scmp.ne.s32.totalorder %s152, %s168
      %p170 = scmp.eq.s32.totalorder %s20, 0
      %p171 = por %p169, %p170
      %p172 = scmp.le.s32.totalorder 1, %s14
      %p173 = scmp.lt.s32.totalorder %s14, 3
      %p174 = pnand %p172, %p173
      %p175 = pneg %p174
      // Predicated region
      $region9: #{tpu_custom_call.1} parent=5 // pred_check
        _
      $region10: #{tpu_custom_call.1} parent=5 // pred_check_branch
        %177 = sbr.rel (%p174) target = $region12
      $region11: #{tpu_custom_call.1} parent=5 // pred_region
        %s178 = ssub.s32 %s14, 1
        // Predicated region
        $region13: #{tpu_custom_call.1} parent=11 // pred_check
          %p179 = pneg %p73
        $region14: #{tpu_custom_call.1} parent=11 // pred_check_branch
          %181 = sbr.rel (%p179) target = $region16
        $region15: #{tpu_custom_call.1} parent=11 // pred_region
          _
        $region16: #{tpu_custom_call.1} parent=11 // pred_fallthru
          _
        // Predicated region
        $region17: #{tpu_custom_call.1} parent=11 // pred_check
          %p182 = pneg %p94
        $region18: #{tpu_custom_call.1} parent=11 // pred_check_branch
          %184 = sbr.rel (%p182) target = $region20
        $region19: #{tpu_custom_call.1} parent=11 // pred_region
          _
        $region20: #{tpu_custom_call.1} parent=11 // pred_fallthru
          _
        // Predicated region
        $region21: #{tpu_custom_call.1} parent=11 // pred_check
          %p185 = pneg %p115
        $region22: #{tpu_custom_call.1} parent=11 // pred_check_branch
          %187 = sbr.rel (%p185) target = $region24
        $region23: #{tpu_custom_call.1} parent=11 // pred_region
          _
        $region24: #{tpu_custom_call.1} parent=11 // pred_fallthru
          _
        // Predicated region
        $region25: #{tpu_custom_call.1} parent=11 // pred_check
          %p188 = pneg %p136
        $region26: #{tpu_custom_call.1} parent=11 // pred_check_branch
          %190 = sbr.rel (%p188) target = $region28
        $region27: #{tpu_custom_call.1} parent=11 // pred_region
          _
        $region28: #{tpu_custom_call.1} parent=11 // pred_fallthru
          _
      $region12: #{tpu_custom_call.1} parent=5 // pred_fallthru
        _
      %p191 = scmp.lt.s32.totalorder %s14, 2
      // Predicated region
      $region29: #{tpu_custom_call.1} parent=5 // pred_check
        %p192 = pneg %p191
      $region30: #{tpu_custom_call.1} parent=5 // pred_check_branch
        %194 = sbr.rel (%p192) target = $region32
      $region31: #{tpu_custom_call.1} parent=5 // pred_region
        // Predicated region
        $region33: #{tpu_custom_call.1} parent=31 // pred_check
          %p195 = pneg %p46
        $region34: #{tpu_custom_call.1} parent=31 // pred_check_branch
          %197 = sbr.rel (%p195) target = $region36
        $region35: #{tpu_custom_call.1} parent=31 // pred_region
          %p198 = scmp.lt.s32.totalorder %s21, 1
          %s199 = scalar_select %p198, %s21, 1
          %s200 = smul.addr %s199, 36
          %s201 = smul.addr %s200, 8
          %s202 = scalar_lea.vmem %s0, %s201
        $region36: #{tpu_custom_call.1} parent=31 // pred_fallthru
          _
      $region32: #{tpu_custom_call.1} parent=5 // pred_fallthru
        _
      %p203 = scmp.le.s32.totalorder 1, %s14
      %p204 = scmp.lt.s32.totalorder %s14, 3
      %p205 = pnand %p203, %p204
      %p206 = pneg %p205
      // Predicated region
      $region37: #{tpu_custom_call.1} parent=5 // pred_check
        _
      $region38: #{tpu_custom_call.1} parent=5 // pred_check_branch
        %208 = sbr.rel (%p205) target = $region40
      $region39: #{tpu_custom_call.1} parent=5 // pred_region
        %s209 = ssub.s32 %s14, 1
        %p210 = scmp.lt.s32.totalorder %s23, 1
        %s211 = scalar_select %p210, %s23, 1
        %s212 = smul.addr %s211, 36
        %s213 = smul.addr %s212, 8
        %s214 = scalar_lea.vmem %s0, %s213
        %p215 = pneg %p52
        %p216 = pneg %p49
        %p217 = pneg %p73
        %p218 = pneg %p70
        %p219 = pneg %p94
        %p220 = pneg %p91
        %p221 = pneg %p115
        %p222 = pneg %p112
        %p223 = pneg %p136
        %p224 = pneg %p133
        %p225 = pneg %p164
        %p226 = pneg %p161
        %s227 = sand.u32 %s151, 1
        %s228 = scalar_lea.sflag [#allocation3], %s227
        %s229 = sand.u32 %s151, 1
        %s230 = smul.addr %s229, 256
        %s231 = scalar_lea.vmem [#allocation2], %s230
        %p232 = scmp.lt.s32.totalorder %s23, 1
        %s233 = scalar_select %p232, %s23, 1
        %s234 = smul.addr %s233, 36
        %s235 = smul.addr %s234, 8
        %s236 = scalar_lea.vmem %s0, %s235
        %s237 = smul.u32 16, %s24
        %s239 = smul.u32 %s24, 16
        %s240 = smul.u32 %s239, 16
        %s241 = scalar_lea.vmem %s236, %s240
        %v242 = vld [vmem:[%s241] sm:$0xff]
        %v243 = vld [vmem:[%s241 + $0x8] sm:$0xff]
        %v244 = vld [vmem:[%s241 + $0x10] sm:$0xff]
        %v245 = vld [vmem:[%s241 + $0x18] sm:$0xff]
        %v246 = vld [vmem:[%s241 + $0x20] sm:$0xff]
        %v247 = vld [vmem:[%s241 + $0x28] sm:$0xff]
        %v248 = vld [vmem:[%s241 + $0x30] sm:$0xff]
        %v249 = vld [vmem:[%s241 + $0x38] sm:$0xff]
        %v250 = vld [vmem:[%s241 + $0x40] sm:$0xff]
        %v251 = vld [vmem:[%s241 + $0x48] sm:$0xff]
        %v252 = vld [vmem:[%s241 + $0x50] sm:$0xff]
        %v253 = vld [vmem:[%s241 + $0x58] sm:$0xff]
        %v254 = vld [vmem:[%s241 + $0x60] sm:$0xff]
        %v255 = vld [vmem:[%s241 + $0x68] sm:$0xff]
        %v256 = vld [vmem:[%s241 + $0x70] sm:$0xff]
        %v257 = vld [vmem:[%s241 + $0x78] sm:$0xff]
        %v258 = vld [vmem:[%s241 + $0x80] sm:$0xff]
        %v259 = vld [vmem:[%s241 + $0x88] sm:$0xff]
        %v260 = vld [vmem:[%s241 + $0x90] sm:$0xff]
        %v261 = vld [vmem:[%s241 + $0x98] sm:$0xff]
        %v262 = vld [vmem:[%s241 + $0xa0] sm:$0xff]
        %v263 = vld [vmem:[%s241 + $0xa8] sm:$0xff]
        %v264 = vld [vmem:[%s241 + $0xb0] sm:$0xff]
        %v265 = vld [vmem:[%s241 + $0xb8] sm:$0xff]
        %v266 = vld [vmem:[%s241 + $0xc0] sm:$0xff]
        %v267 = vld [vmem:[%s241 + $0xc8] sm:$0xff]
        %v268 = vld [vmem:[%s241 + $0xd0] sm:$0xff]
        %v269 = vld [vmem:[%s241 + $0xd8] sm:$0xff]
        %v270 = vld [vmem:[%s241 + $0xe0] sm:$0xff]
        %v271 = vld [vmem:[%s241 + $0xe8] sm:$0xff]
        %v272 = vld [vmem:[%s241 + $0xf0] sm:$0xff]
        %v273 = vld [vmem:[%s241 + $0xf8] sm:$0xff]
        %v274 = vld [vmem:[%s241 + $0x100] sm:$0xff]
        %v275 = vld [vmem:[%s241 + $0x108] sm:$0xff]
        %v276 = vld [vmem:[%s241 + $0x110] sm:$0xff]
        %v277 = vld [vmem:[%s241 + $0x118] sm:$0xff]
        %v278 = vpack.c.bf16 %v243, %v242
        %v279 = vpack.c.bf16 %v245, %v244
        %v280 = vpack.c.bf16 %v247, %v246
        %v281 = vpack.c.bf16 %v249, %v248
        %v282 = vpack.c.bf16 %v251, %v250
        %v283 = vpack.c.bf16 %v253, %v252
        %v284 = vpack.c.bf16 %v255, %v254
        %v285 = vpack.c.bf16 %v257, %v256
        %v286 = vpack.c.bf16 %v259, %v258
        %v287 = vpack.c.bf16 %v261, %v260
        %v288 = vpack.c.bf16 %v263, %v262
        %v289 = vpack.c.bf16 %v265, %v264
        %v290 = vpack.c.bf16 %v267, %v266
        %v291 = vpack.c.bf16 %v269, %v268
        %v292 = vpack.c.bf16 %v271, %v270
        %v293 = vpack.c.bf16 %v273, %v272
        %v294 = vpack.c.bf16 %v275, %v274
        %v295 = vpack.c.bf16 %v277, %v276
        %v296 = vld [vmem:[%s1] sm:$0xf]
        %v297 = vld [vmem:[%s1 + $0x4] sm:$0xf]
        %v298 = vld [vmem:[%s2] sm:$0x1]
        %v300 = vlaneseq
        %v301 = vshrl.u32 %v300, 7
        %v302 = vsub.s32 0, %v301
        %v303 = vrot.slane %v298, %v302
        %v307 = vunpack.c.l.b16 %v296
        %v308 = vunpack.c.l.b16 %v297
        %v309 = vpack.c.b16 %v308, %v307
        %vm311 = vcmask 130048
        %v313 = vsel %vm311, %v278, 0
        %v316 = vsel %vm311, %v279, 0
        %v319 = vsel %vm311, %v280, 0
        %v322 = vsel %vm311, %v281, 0
        %v325 = vsel %vm311, %v282, 0
        %v328 = vsel %vm311, %v283, 0
        %v331 = vsel %vm311, %v284, 0
        %v334 = vsel %vm311, %v285, 0
        %v337 = vsel %vm311, %v286, 0
        %v340 = vsel %vm311, %v287, 0
        %v343 = vsel %vm311, %v288, 0
        %v346 = vsel %vm311, %v289, 0
        %v349 = vsel %vm311, %v290, 0
        %v352 = vsel %vm311, %v291, 0
        %v355 = vsel %vm311, %v292, 0
        %v358 = vsel %vm311, %v293, 0
        %v361 = vsel %vm311, %v294, 0
        %v364 = vsel %vm311, %v295, 0
        %366 = vmatprep.subr.bf16.mxu0 0
        %367 = vmatpush1.bf16.msra.mxu0 %v309
        %368 = vmatprep.subr.bf16.mxu0 0
        %369 = vmatpush1.bf16.msra.mxu0 0
        %370 = vmatprep.subr.bf16.mxu0 0
        %371 = vmatpush1.bf16.msra.mxu0 0
        %372 = vmatprep.subr.bf16.mxu0 0
        %373 = vmatpush1.bf16.msra.mxu0 0
        %374 = vmatprep.subr.bf16.mxu0 0
        %375 = vmatpush1.bf16.msra.mxu0 0
        %376 = vmatprep.subr.bf16.mxu0 0
        %377 = vmatpush1.bf16.msra.mxu0 0
        %378 = vmatprep.subr.bf16.mxu0 0
        %379 = vmatpush1.bf16.msra.mxu0 0
        %380 = vmatprep.subr.bf16.mxu0 0
        %381 = vmatpush1.bf16.msra.mxu0 0
        %382 = vmatprep.subr.bf16.mxu0 0
        %383 = vmatpush1.bf16.msra.mxu0 0
        %384 = vmatprep.subr.bf16.mxu0 0
        %385 = vmatpush1.bf16.msra.mxu0 0
        %386 = vmatprep.subr.bf16.mxu0 0
        %387 = vmatpush1.bf16.msra.mxu0 0
        %388 = vmatprep.subr.bf16.mxu0 0
        %389 = vmatpush1.bf16.msra.mxu0 0
        %390 = vmatprep.subr.bf16.mxu0 0
        %391 = vmatpush1.bf16.msra.mxu0 0
        %392 = vmatprep.subr.bf16.mxu0 0
        %393 = vmatpush1.bf16.msra.mxu0 0
        %394 = vmatprep.subr.bf16.mxu0 0
        %395 = vmatpush1.bf16.msra.mxu0 0
        %396 = vmatprep.subr.bf16.mxu0 0
        %397 = vmatpush1.bf16.msra.mxu0 0
        %398 = vmatprep.mubr.bf16.mxu0 0
        %399 = vmatmul.mubr.bf16.gmra.mrb[0].mxu0 %v313
        %v400 = vpop.f32.mrb[0].mxu0
        %v401 = vadd.f32 %v303, %v400
        %v402 = vpop.f32.mrb[0].mxu0
        %v403 = vpop.f32.mrb[0].mxu0
        %v404 = vadd.f32 %v303, %v403
        %v405 = vpop.f32.mrb[0].mxu0
        %406 = vmatprep.mubr.bf16.mxu0 0
        %407 = vmatmul.mubr.bf16.gmra.mrb[0].mxu0 %v316
        %v408 = vpop.f32.mrb[0].mxu0
        %v409 = vadd.f32 %v303, %v408
        %v410 = vpop.f32.mrb[0].mxu0
        %v411 = vpop.f32.mrb[0].mxu0
        %v412 = vadd.f32 %v303, %v411
        %v413 = vpop.f32.mrb[0].mxu0
        %414 = vmatprep.mubr.bf16.mxu0 0
        %415 = vmatmul.mubr.bf16.gmra.mrb[0].mxu0 %v319
        %v416 = vpop.f32.mrb[0].mxu0
        %v417 = vadd.f32 %v303, %v416
        %v418 = vpop.f32.mrb[0].mxu0
        %v419 = vpop.f32.mrb[0].mxu0
        %v420 = vadd.f32 %v303, %v419
        %v421 = vpop.f32.mrb[0].mxu0
        %422 = vmatprep.mubr.bf16.mxu0 0
        %423 = vmatmul.mubr.bf16.gmra.mrb[0].mxu0 %v322
        %v424 = vpop.f32.mrb[0].mxu0
        %v425 = vadd.f32 %v303, %v424
        %v426 = vpop.f32.mrb[0].mxu0
        %v427 = vpop.f32.mrb[0].mxu0
        %v428 = vadd.f32 %v303, %v427
        %v429 = vpop.f32.mrb[0].mxu0
        %430 = vmatprep.mubr.bf16.mxu0 0
        %431 = vmatmul.mubr.bf16.gmra.mrb[0].mxu0 %v325
        %v432 = vpop.f32.mrb[0].mxu0
        %v433 = vadd.f32 %v303, %v432
        %v434 = vpop.f32.mrb[0].mxu0
        %v435 = vpop.f32.mrb[0].mxu0
        %v436 = vadd.f32 %v303, %v435
        %v437 = vpop.f32.mrb[0].mxu0
        %438 = vmatprep.mubr.bf16.mxu0 0
        %439 = vmatmul.mubr.bf16.gmra.mrb[0].mxu0 %v328
        %v440 = vpop.f32.mrb[0].mxu0
        %v441 = vadd.f32 %v303, %v440
        %v442 = vpop.f32.mrb[0].mxu0
        %v443 = vpop.f32.mrb[0].mxu0
        %v444 = vadd.f32 %v303, %v443
        %v445 = vpop.f32.mrb[0].mxu0
        %446 = vmatprep.mubr.bf16.mxu0 0
        %447 = vmatmul.mubr.bf16.gmra.mrb[0].mxu0 %v331
        %v448 = vpop.f32.mrb[0].mxu0
        %v449 = vadd.f32 %v303, %v448
        %v450 = vpop.f32.mrb[0].mxu0
        %v451 = vpop.f32.mrb[0].mxu0
        %v452 = vadd.f32 %v303, %v451
        %v453 = vpop.f32.mrb[0].mxu0
        %454 = vmatprep.mubr.bf16.mxu0 0
        %455 = vmatmul.mubr.bf16.gmra.mrb[0].mxu0 %v334
        %v456 = vpop.f32.mrb[0].mxu0
        %v457 = vadd.f32 %v303, %v456
        %v458 = vpop.f32.mrb[0].mxu0
        %v459 = vpop.f32.mrb[0].mxu0
        %v460 = vadd.f32 %v303, %v459
        %v461 = vpop.f32.mrb[0].mxu0
        %462 = vmatprep.mubr.bf16.mxu0 0
        %463 = vmatmul.mubr.bf16.gmra.mrb[0].mxu0 %v337
        %v464 = vpop.f32.mrb[0].mxu0
        %v465 = vadd.f32 %v303, %v464
        %v466 = vpop.f32.mrb[0].mxu0
        %v467 = vpop.f32.mrb[0].mxu0
        %v468 = vadd.f32 %v303, %v467
        %v469 = vpop.f32.mrb[0].mxu0
        %470 = vmatprep.mubr.bf16.mxu0 0
        %471 = vmatmul.mubr.bf16.gmra.mrb[0].mxu0 %v340
        %v472 = vpop.f32.mrb[0].mxu0
        %v473 = vadd.f32 %v303, %v472
        %v474 = vpop.f32.mrb[0].mxu0
        %v475 = vpop.f32.mrb[0].mxu0
        %v476 = vadd.f32 %v303, %v475
        %v477 = vpop.f32.mrb[0].mxu0
        %478 = vmatprep.mubr.bf16.mxu0 0
        %479 = vmatmul.mubr.bf16.gmra.mrb[0].mxu0 %v343
        %v480 = vpop.f32.mrb[0].mxu0
        %v481 = vadd.f32 %v303, %v480
        %v482 = vpop.f32.mrb[0].mxu0
        %v483 = vpop.f32.mrb[0].mxu0
        %v484 = vadd.f32 %v303, %v483
        %v485 = vpop.f32.mrb[0].mxu0
        %486 = vmatprep.mubr.bf16.mxu0 0
        %487 = vmatmul.mubr.bf16.gmra.mrb[0].mxu0 %v346
        %v488 = vpop.f32.mrb[0].mxu0
        %v489 = vadd.f32 %v303, %v488
        %v490 = vpop.f32.mrb[0].mxu0
        %v491 = vpop.f32.mrb[0].mxu0
        %v492 = vadd.f32 %v303, %v491
        %v493 = vpop.f32.mrb[0].mxu0
        %494 = vmatprep.mubr.bf16.mxu0 0
        %495 = vmatmul.mubr.bf16.gmra.mrb[0].mxu0 %v349
        %v496 = vpop.f32.mrb[0].mxu0
        %v497 = vadd.f32 %v303, %v496
        %v498 = vpop.f32.mrb[0].mxu0
        %v499 = vpop.f32.mrb[0].mxu0
        %v500 = vadd.f32 %v303, %v499
        %v501 = vpop.f32.mrb[0].mxu0
        %502 = vmatprep.mubr.bf16.mxu0 0
        %503 = vmatmul.mubr.bf16.gmra.mrb[0].mxu0 %v352
        %v504 = vpop.f32.mrb[0].mxu0
        %v505 = vadd.f32 %v303, %v504
        %v506 = vpop.f32.mrb[0].mxu0
        %v507 = vpop.f32.mrb[0].mxu0
        %v508 = vadd.f32 %v303, %v507
        %v509 = vpop.f32.mrb[0].mxu0
        %510 = vmatprep.mubr.bf16.mxu0 0
        %511 = vmatmul.mubr.bf16.gmra.mrb[0].mxu0 %v355
        %v512 = vpop.f32.mrb[0].mxu0
        %v513 = vadd.f32 %v303, %v512
        %v514 = vpop.f32.mrb[0].mxu0
        %v515 = vpop.f32.mrb[0].mxu0
        %v516 = vadd.f32 %v303, %v515
        %v517 = vpop.f32.mrb[0].mxu0
        %518 = vmatprep.mubr.bf16.mxu0 0
        %519 = vmatmul.mubr.bf16.gmra.mrb[0].mxu0 %v358
        %v520 = vpop.f32.mrb[0].mxu0
        %v521 = vadd.f32 %v303, %v520
        %v522 = vpop.f32.mrb[0].mxu0
        %v523 = vpop.f32.mrb[0].mxu0
        %v524 = vadd.f32 %v303, %v523
        %v525 = vpop.f32.mrb[0].mxu0
        %526 = vmatprep.mubr.bf16.mxu0 0
        %527 = vmatmul.mubr.bf16.gmra.mrb[0].mxu0 %v361
        %v528 = vpop.f32.mrb[0].mxu0
        %v529 = vadd.f32 %v303, %v528
        %v530 = vpop.f32.mrb[0].mxu0
        %v531 = vpop.f32.mrb[0].mxu0
        %v532 = vadd.f32 %v303, %v531
        %v533 = vpop.f32.mrb[0].mxu0
        %534 = vmatprep.mubr.bf16.mxu0 0
        %535 = vmatmul.mubr.bf16.gmra.mrb[0].mxu0 %v364
        %v536 = vpop.f32.mrb[0].mxu0
        %v537 = vadd.f32 %v303, %v536
        %v538 = vpop.f32.mrb[0].mxu0
        %v539 = vpop.f32.mrb[0].mxu0
        %v540 = vadd.f32 %v303, %v539
        %v541 = vpop.f32.mrb[0].mxu0
        %542 = vdwg.mxu0
        %v543 = vmul.f32 %v401, 0.5
        %v544 = vmul.f32 %v404, 0.5
        %v545 = vmul.f32 %v409, 0.5
        %v546 = vmul.f32 %v412, 0.5
        %v547 = vmul.f32 %v417, 0.5
        %v548 = vmul.f32 %v420, 0.5
        %v549 = vmul.f32 %v425, 0.5
        %v550 = vmul.f32 %v428, 0.5
        %v551 = vmul.f32 %v433, 0.5
        %v552 = vmul.f32 %v436, 0.5
        %v553 = vmul.f32 %v441, 0.5
        %v554 = vmul.f32 %v444, 0.5
        %v555 = vmul.f32 %v449, 0.5
        %v556 = vmul.f32 %v452, 0.5
        %v557 = vmul.f32 %v457, 0.5
        %v558 = vmul.f32 %v460, 0.5
        %v559 = vmul.f32 %v465, 0.5
        %v560 = vmul.f32 %v468, 0.5
        %v561 = vmul.f32 %v473, 0.5
        %v562 = vmul.f32 %v476, 0.5
        %v563 = vmul.f32 %v481, 0.5
        %v564 = vmul.f32 %v484, 0.5
        %v565 = vmul.f32 %v489, 0.5
        %v566 = vmul.f32 %v492, 0.5
        %v567 = vmul.f32 %v497, 0.5
        %v568 = vmul.f32 %v500, 0.5
        %v569 = vmul.f32 %v505, 0.5
        %v570 = vmul.f32 %v508, 0.5
        %v571 = vmul.f32 %v513, 0.5
        %v572 = vmul.f32 %v516, 0.5
        %v573 = vmul.f32 %v521, 0.5
        %v574 = vmul.f32 %v524, 0.5
        %v575 = vmul.f32 %v529, 0.5
        %v576 = vmul.f32 %v532, 0.5
        %v577 = vmul.f32 %v537, 0.5
        %v578 = vmul.f32 %v540, 0.5
        %v579 = vtanh.pop %v543
        %v580 = vtanh.pop %v544
        %v581 = vtanh.pop %v545
        %v582 = vtanh.pop %v546
        %v583 = vtanh.pop %v547
        %v584 = vtanh.pop %v548
        %v585 = vtanh.pop %v549
        %v586 = vtanh.pop %v550
        %v587 = vtanh.pop %v551
        %v588 = vtanh.pop %v552
        %v589 = vtanh.pop %v553
        %v590 = vtanh.pop %v554
        %v591 = vtanh.pop %v555
        %v592 = vtanh.pop %v556
        %v593 = vtanh.pop %v557
        %v594 = vtanh.pop %v558
        %v595 = vtanh.pop %v559
        %v596 = vtanh.pop %v560
        %v597 = vtanh.pop %v561
        %v598 = vtanh.pop %v562
        %v599 = vtanh.pop %v563
        %v600 = vtanh.pop %v564
        %v601 = vtanh.pop %v565
        %v602 = vtanh.pop %v566
        %v603 = vtanh.pop %v567
        %v604 = vtanh.pop %v568
        %v605 = vtanh.pop %v569
        %v606 = vtanh.pop %v570
        %v607 = vtanh.pop %v571
        %v608 = vtanh.pop %v572
        %v609 = vtanh.pop %v573
        %v610 = vtanh.pop %v574
        %v611 = vtanh.pop %v575
        %v612 = vtanh.pop %v576
        %v613 = vtanh.pop %v577
        %v614 = vtanh.pop %v578
        %v615 = vadd.f32 %v579, 1.0
        %v616 = vadd.f32 %v580, 1.0
        %v617 = vadd.f32 %v581, 1.0
        %v618 = vadd.f32 %v582, 1.0
        %v619 = vadd.f32 %v583, 1.0
        %v620 = vadd.f32 %v584, 1.0
        %v621 = vadd.f32 %v585, 1.0
        %v622 = vadd.f32 %v586, 1.0
        %v623 = vadd.f32 %v587, 1.0
        %v624 = vadd.f32 %v588, 1.0
        %v625 = vadd.f32 %v589, 1.0
        %v626 = vadd.f32 %v590, 1.0
        %v627 = vadd.f32 %v591, 1.0
        %v628 = vadd.f32 %v592, 1.0
        %v629 = vadd.f32 %v593, 1.0
        %v630 = vadd.f32 %v594, 1.0
        %v631 = vadd.f32 %v595, 1.0
        %v632 = vadd.f32 %v596, 1.0
        %v633 = vadd.f32 %v597, 1.0
        %v634 = vadd.f32 %v598, 1.0
        %v635 = vadd.f32 %v599, 1.0
        %v636 = vadd.f32 %v600, 1.0
        %v637 = vadd.f32 %v601, 1.0
        %v638 = vadd.f32 %v602, 1.0
        %v639 = vadd.f32 %v603, 1.0
        %v640 = vadd.f32 %v604, 1.0
        %v641 = vadd.f32 %v605, 1.0
        %v642 = vadd.f32 %v606, 1.0
        %v643 = vadd.f32 %v607, 1.0
        %v644 = vadd.f32 %v608, 1.0
        %v645 = vadd.f32 %v609, 1.0
        %v646 = vadd.f32 %v610, 1.0
        %v647 = vadd.f32 %v611, 1.0
        %v648 = vadd.f32 %v612, 1.0
        %v649 = vadd.f32 %v613, 1.0
        %v650 = vadd.f32 %v614, 1.0
        %v651 = vmul.f32 %v543, %v615
        %v652 = vmul.f32 %v544, %v616
        %v653 = vmul.f32 %v545, %v617
        %v654 = vmul.f32 %v546, %v618
        %v655 = vmul.f32 %v547, %v619
        %v656 = vmul.f32 %v548, %v620
        %v657 = vmul.f32 %v549, %v621
        %v658 = vmul.f32 %v550, %v622
        %v659 = vmul.f32 %v551, %v623
        %v660 = vmul.f32 %v552, %v624
        %v661 = vmul.f32 %v553, %v625
        %v662 = vmul.f32 %v554, %v626
        %v663 = vmul.f32 %v555, %v627
        %v664 = vmul.f32 %v556, %v628
        %v665 = vmul.f32 %v557, %v629
        %v666 = vmul.f32 %v558, %v630
        %v667 = vmul.f32 %v559, %v631
        %v668 = vmul.f32 %v560, %v632
        %v669 = vmul.f32 %v561, %v633
        %v670 = vmul.f32 %v562, %v634
        %v671 = vmul.f32 %v563, %v635
        %v672 = vmul.f32 %v564, %v636
        %v673 = vmul.f32 %v565, %v637
        %v674 = vmul.f32 %v566, %v638
        %v675 = vmul.f32 %v567, %v639
        %v676 = vmul.f32 %v568, %v640
        %v677 = vmul.f32 %v569, %v641
        %v678 = vmul.f32 %v570, %v642
        %v679 = vmul.f32 %v571, %v643
        %v680 = vmul.f32 %v572, %v644
        %v681 = vmul.f32 %v573, %v645
        %v682 = vmul.f32 %v574, %v646
        %v683 = vmul.f32 %v575, %v647
        %v684 = vmul.f32 %v576, %v648
        %v685 = vmul.f32 %v577, %v649
        %v686 = vmul.f32 %v578, %v650
        %v687 = vlaneseq
        %v688 = vshrl.u32 %v687, 7
        %v689 = vadd.s32 %v688, 8
        %v690 = vadd.s32 %v688, 16
        %v691 = vlaneseq
        %v692 = vshrl.u32 %v691, 7
        %v693 = vsub.s32 0, %v692
        %v694 = vrot.slane %v688, %v693
        %v695 = vlaneseq
        %v696 = vshrl.u32 %v695, 7
        %v697 = vsub.s32 1, %v696
        %v698 = vrot.slane %v688, %v697
        %v699 = vlaneseq
        %v700 = vshrl.u32 %v699, 7
        %v701 = vsub.s32 2, %v700
        %v702 = vrot.slane %v688, %v701
        %v703 = vlaneseq
        %v704 = vshrl.u32 %v703, 7
        %v705 = vsub.s32 3, %v704
        %v706 = vrot.slane %v688, %v705
        %v707 = vlaneseq
        %v708 = vshrl.u32 %v707, 7
        %v709 = vsub.s32 4, %v708
        %v710 = vrot.slane %v688, %v709
        %v711 = vlaneseq
        %v712 = vshrl.u32 %v711, 7
        %v713 = vsub.s32 5, %v712
        %v714 = vrot.slane %v688, %v713
        %v715 = vlaneseq
        %v716 = vshrl.u32 %v715, 7
        %v717 = vsub.s32 6, %v716
        %v718 = vrot.slane %v688, %v717
        %v719 = vlaneseq
        %v720 = vshrl.u32 %v719, 7
        %v721 = vsub.s32 7, %v720
        %v722 = vrot.slane %v688, %v721
        %v723 = vlaneseq
        %v724 = vshrl.u32 %v723, 7
        %v725 = vsub.s32 0, %v724
        %v726 = vrot.slane %v689, %v725
        %v727 = vlaneseq
        %v728 = vshrl.u32 %v727, 7
        %v729 = vsub.s32 1, %v728
        %v730 = vrot.slane %v689, %v729
        %v731 = vlaneseq
        %v732 = vshrl.u32 %v731, 7
        %v733 = vsub.s32 2, %v732
        %v734 = vrot.slane %v689, %v733
        %v735 = vlaneseq
        %v736 = vshrl.u32 %v735, 7
        %v737 = vsub.s32 3, %v736
        %v738 = vrot.slane %v689, %v737
        %v739 = vlaneseq
        %v740 = vshrl.u32 %v739, 7
        %v741 = vsub.s32 4, %v740
        %v742 = vrot.slane %v689, %v741
        %v743 = vlaneseq
        %v744 = vshrl.u32 %v743, 7
        %v745 = vsub.s32 5, %v744
        %v746 = vrot.slane %v689, %v745
        %v747 = vlaneseq
        %v748 = vshrl.u32 %v747, 7
        %v749 = vsub.s32 6, %v748
        %v750 = vrot.slane %v689, %v749
        %v751 = vlaneseq
        %v752 = vshrl.u32 %v751, 7
        %v753 = vsub.s32 7, %v752
        %v754 = vrot.slane %v689, %v753
        %v755 = vlaneseq
        %v756 = vshrl.u32 %v755, 7
        %v757 = vsub.s32 0, %v756
        %v758 = vrot.slane %v690, %v757
        %v759 = vlaneseq
        %v760 = vshrl.u32 %v759, 7
        %v761 = vsub.s32 1, %v760
        %v762 = vrot.slane %v690, %v761
        %v763 = vstv %s239
        %v764 = vadd.s32 %v763, %v694
        %v765 = vadd.s32 %v763, %v698
        %v766 = vadd.s32 %v763, %v702
        %v767 = vadd.s32 %v763, %v706
        %v768 = vadd.s32 %v763, %v710
        %v769 = vadd.s32 %v763, %v714
        %v770 = vadd.s32 %v763, %v718
        %v771 = vadd.s32 %v763, %v722
        %v772 = vadd.s32 %v763, %v726
        %v773 = vadd.s32 %v763, %v730
        %v774 = vadd.s32 %v763, %v734
        %v775 = vadd.s32 %v763, %v738
        %v776 = vadd.s32 %v763, %v742
        %v777 = vadd.s32 %v763, %v746
        %v778 = vadd.s32 %v763, %v750
        %v779 = vadd.s32 %v763, %v754
        %v780 = vadd.s32 %v763, %v758
        %v781 = vadd.s32 %v763, %v762
        %vm782 = vcmp.ge.s32.totalorder %v764, 1
        %vm783 = vcmp.ge.s32.totalorder %v765, 1
        %vm784 = vcmp.ge.s32.totalorder %v766, 1
        %vm785 = vcmp.ge.s32.totalorder %v767, 1
        %vm786 = vcmp.ge.s32.totalorder %v768, 1
        %vm787 = vcmp.ge.s32.totalorder %v769, 1
        %vm788 = vcmp.ge.s32.totalorder %v770, 1
        %vm789 = vcmp.ge.s32.totalorder %v771, 1
        %vm790 = vcmp.ge.s32.totalorder %v772, 1
        %vm791 = vcmp.ge.s32.totalorder %v773, 1
        %vm792 = vcmp.ge.s32.totalorder %v774, 1
        %vm793 = vcmp.ge.s32.totalorder %v775, 1
        %vm794 = vcmp.ge.s32.totalorder %v776, 1
        %vm795 = vcmp.ge.s32.totalorder %v777, 1
        %vm796 = vcmp.ge.s32.totalorder %v778, 1
        %vm797 = vcmp.ge.s32.totalorder %v779, 1
        %vm798 = vcmp.ge.s32.totalorder %v780, 1
        %vm799 = vcmp.ge.s32.totalorder %v781, 1
        %vm800 = vcmp.le.s32.totalorder %v764, 16
        %vm801 = vcmp.le.s32.totalorder %v765, 16
        %vm802 = vcmp.le.s32.totalorder %v766, 16
        %vm803 = vcmp.le.s32.totalorder %v767, 16
        %vm804 = vcmp.le.s32.totalorder %v768, 16
        %vm805 = vcmp.le.s32.totalorder %v769, 16
        %vm806 = vcmp.le.s32.totalorder %v770, 16
        %vm807 = vcmp.le.s32.totalorder %v771, 16
        %vm808 = vcmp.le.s32.totalorder %v772, 16
        %vm809 = vcmp.le.s32.totalorder %v773, 16
        %vm810 = vcmp.le.s32.totalorder %v774, 16
        %vm811 = vcmp.le.s32.totalorder %v775, 16
        %vm812 = vcmp.le.s32.totalorder %v776, 16
        %vm813 = vcmp.le.s32.totalorder %v777, 16
        %vm814 = vcmp.le.s32.totalorder %v778, 16
        %vm815 = vcmp.le.s32.totalorder %v779, 16
        %vm816 = vcmp.le.s32.totalorder %v780, 16
        %vm817 = vcmp.le.s32.totalorder %v781, 16
        %vm818 = vmand %vm782, %vm800
        %vm819 = vmand %vm783, %vm801
        %vm820 = vmand %vm784, %vm802
        %vm821 = vmand %vm785, %vm803
        %vm822 = vmand %vm786, %vm804
        %vm823 = vmand %vm787, %vm805
        %vm824 = vmand %vm788, %vm806
        %vm825 = vmand %vm789, %vm807
        %vm826 = vmand %vm790, %vm808
        %vm827 = vmand %vm791, %vm809
        %vm828 = vmand %vm792, %vm810
        %vm829 = vmand %vm793, %vm811
        %vm830 = vmand %vm794, %vm812
        %vm831 = vmand %vm795, %vm813
        %vm832 = vmand %vm796, %vm814
        %vm833 = vmand %vm797, %vm815
        %vm834 = vmand %vm798, %vm816
        %vm835 = vmand %vm799, %vm817
        %v836 = vsel %vm818, 1, 0
        %v837 = vsel %vm819, 1, 0
        %v838 = vsel %vm820, 1, 0
        %v839 = vsel %vm821, 1, 0
        %v840 = vsel %vm822, 1, 0
        %v841 = vsel %vm823, 1, 0
        %v842 = vsel %vm824, 1, 0
        %v843 = vsel %vm825, 1, 0
        %v844 = vsel %vm826, 1, 0
        %v845 = vsel %vm827, 1, 0
        %v846 = vsel %vm828, 1, 0
        %v847 = vsel %vm829, 1, 0
        %v848 = vsel %vm830, 1, 0
        %v849 = vsel %vm831, 1, 0
        %v850 = vsel %vm832, 1, 0
        %v851 = vsel %vm833, 1, 0
        %v852 = vsel %vm834, 1, 0
        %v853 = vsel %vm835, 1, 0
        %vm854 = vcmp.eq.s32.totalorder %v836, 1
        %vm855 = vcmp.eq.s32.totalorder %v837, 1
        %vm856 = vcmp.eq.s32.totalorder %v838, 1
        %vm857 = vcmp.eq.s32.totalorder %v839, 1
        %vm858 = vcmp.eq.s32.totalorder %v840, 1
        %vm859 = vcmp.eq.s32.totalorder %v841, 1
        %vm860 = vcmp.eq.s32.totalorder %v842, 1
        %vm861 = vcmp.eq.s32.totalorder %v843, 1
        %vm862 = vcmp.eq.s32.totalorder %v844, 1
        %vm863 = vcmp.eq.s32.totalorder %v845, 1
        %vm864 = vcmp.eq.s32.totalorder %v846, 1
        %vm865 = vcmp.eq.s32.totalorder %v847, 1
        %vm866 = vcmp.eq.s32.totalorder %v848, 1
        %vm867 = vcmp.eq.s32.totalorder %v849, 1
        %vm868 = vcmp.eq.s32.totalorder %v850, 1
        %vm869 = vcmp.eq.s32.totalorder %v851, 1
        %vm870 = vcmp.eq.s32.totalorder %v852, 1
        %vm871 = vcmp.eq.s32.totalorder %v853, 1
        %v872 = vsel %vm854, %v651, 0.0
        %v873 = vsel %vm854, %v652, 0.0
        %v874 = vsel %vm855, %v653, 0.0
        %v875 = vsel %vm855, %v654, 0.0
        %v876 = vsel %vm856, %v655, 0.0
        %v877 = vsel %vm856, %v656, 0.0
        %v878 = vsel %vm857, %v657, 0.0
        %v879 = vsel %vm857, %v658, 0.0
        %v880 = vsel %vm858, %v659, 0.0
        %v881 = vsel %vm858, %v660, 0.0
        %v882 = vsel %vm859, %v661, 0.0
        %v883 = vsel %vm859, %v662, 0.0
        %v884 = vsel %vm860, %v663, 0.0
        %v885 = vsel %vm860, %v664, 0.0
        %v886 = vsel %vm861, %v665, 0.0
        %v887 = vsel %vm861, %v666, 0.0
        %v888 = vsel %vm862, %v667, 0.0
        %v889 = vsel %vm862, %v668, 0.0
        %v890 = vsel %vm863, %v669, 0.0
        %v891 = vsel %vm863, %v670, 0.0
        %v892 = vsel %vm864, %v671, 0.0
        %v893 = vsel %vm864, %v672, 0.0
        %v894 = vsel %vm865, %v673, 0.0
        %v895 = vsel %vm865, %v674, 0.0
        %v896 = vsel %vm866, %v675, 0.0
        %v897 = vsel %vm866, %v676, 0.0
        %v898 = vsel %vm867, %v677, 0.0
        %v899 = vsel %vm867, %v678, 0.0
        %v900 = vsel %vm868, %v679, 0.0
        %v901 = vsel %vm868, %v680, 0.0
        %v902 = vsel %vm869, %v681, 0.0
        %v903 = vsel %vm869, %v682, 0.0
        %v904 = vsel %vm870, %v683, 0.0
        %v905 = vsel %vm870, %v684, 0.0
        %v906 = vsel %vm871, %v685, 0.0
        %v907 = vsel %vm871, %v686, 0.0
        %v908 = vpack.c.bf16 %v873, %v872
        %v909 = vpack.c.bf16 %v875, %v874
        %v910 = vpack.c.bf16 %v877, %v876
        %v911 = vpack.c.bf16 %v879, %v878
        %v912 = vpack.c.bf16 %v881, %v880
        %v913 = vpack.c.bf16 %v883, %v882
        %v914 = vpack.c.bf16 %v885, %v884
        %v915 = vpack.c.bf16 %v887, %v886
        %v916 = vpack.c.bf16 %v889, %v888
        %v917 = vpack.c.bf16 %v891, %v890
        %v918 = vpack.c.bf16 %v893, %v892
        %v919 = vpack.c.bf16 %v895, %v894
        %v920 = vpack.c.bf16 %v897, %v896
        %v921 = vpack.c.bf16 %v899, %v898
        %v922 = vpack.c.bf16 %v901, %v900
        %v923 = vpack.c.bf16 %v903, %v902
        %v924 = vpack.c.bf16 %v905, %v904
        %v925 = vpack.c.bf16 %v907, %v906
        %v927 = vshrl.u32 %v908, 16
        %v929 = vrot.slane %v927, 7
        %v930 = vshll.u32 %v908, 16
        %v932 = vor.u32 %v929, %v930
        %v934 = vshrl.u32 %v909, 16
        %v936 = vrot.slane %v934, 7
        %v937 = vshll.u32 %v909, 16
        %v939 = vor.u32 %v936, %v937
        %v941 = vshrl.u32 %v910, 16
        %v943 = vrot.slane %v941, 7
        %v944 = vshll.u32 %v910, 16
        %v946 = vor.u32 %v943, %v944
        %v948 = vshrl.u32 %v911, 16
        %v950 = vrot.slane %v948, 7
        %v951 = vshll.u32 %v911, 16
        %v953 = vor.u32 %v950, %v951
        %v955 = vshrl.u32 %v912, 16
        %v957 = vrot.slane %v955, 7
        %v958 = vshll.u32 %v912, 16
        %v960 = vor.u32 %v957, %v958
        %v962 = vshrl.u32 %v913, 16
        %v964 = vrot.slane %v962, 7
        %v965 = vshll.u32 %v913, 16
        %v967 = vor.u32 %v964, %v965
        %v969 = vshrl.u32 %v914, 16
        %v971 = vrot.slane %v969, 7
        %v972 = vshll.u32 %v914, 16
        %v974 = vor.u32 %v971, %v972
        %v976 = vshrl.u32 %v915, 16
        %v978 = vrot.slane %v976, 7
        %v979 = vshll.u32 %v915, 16
        %v981 = vor.u32 %v978, %v979
        %v983 = vshrl.u32 %v916, 16
        %v985 = vrot.slane %v983, 7
        %v986 = vshll.u32 %v916, 16
        %v988 = vor.u32 %v985, %v986
        %v990 = vshrl.u32 %v917, 16
        %v992 = vrot.slane %v990, 7
        %v993 = vshll.u32 %v917, 16
        %v995 = vor.u32 %v992, %v993
        %v997 = vshrl.u32 %v918, 16
        %v999 = vrot.slane %v997, 7
        %v1000 = vshll.u32 %v918, 16
        %v1002 = vor.u32 %v999, %v1000
        %v1004 = vshrl.u32 %v919, 16
        %v1006 = vrot.slane %v1004, 7
        %v1007 = vshll.u32 %v919, 16
        %v1009 = vor.u32 %v1006, %v1007
        %v1011 = vshrl.u32 %v920, 16
        %v1013 = vrot.slane %v1011, 7
        %v1014 = vshll.u32 %v920, 16
        %v1016 = vor.u32 %v1013, %v1014
        %v1018 = vshrl.u32 %v921, 16
        %v1020 = vrot.slane %v1018, 7
        %v1021 = vshll.u32 %v921, 16
        %v1023 = vor.u32 %v1020, %v1021
        %v1025 = vshrl.u32 %v922, 16
        %v1027 = vrot.slane %v1025, 7
        %v1028 = vshll.u32 %v922, 16
        %v1030 = vor.u32 %v1027, %v1028
        %v1032 = vshrl.u32 %v923, 16
        %v1034 = vrot.slane %v1032, 7
        %v1035 = vshll.u32 %v923, 16
        %v1037 = vor.u32 %v1034, %v1035
        %v1039 = vshrl.u32 %v924, 16
        %v1041 = vrot.slane %v1039, 7
        %v1042 = vshll.u32 %v924, 16
        %v1044 = vor.u32 %v1041, %v1042
        %v1046 = vshrl.u32 %v925, 16
        %v1048 = vrot.slane %v1046, 7
        %v1049 = vshll.u32 %v925, 16
        %v1051 = vor.u32 %v1048, %v1049
        %vm1070 = vcmask 1040384
        %vm1071 = vsmask.f32 256
        %vm1072 = vmand %vm1070, %vm1071
        %v1073 = vsel %vm1072, 0, %v932
        %v1074 = vsel %vm1072, 0, %v939
        %v1075 = vsel %vm1072, 0, %v946
        %v1076 = vsel %vm1072, 0, %v953
        %v1077 = vsel %vm1072, 0, %v960
        %v1078 = vsel %vm1072, 0, %v967
        %v1079 = vsel %vm1072, 0, %v974
        %v1080 = vsel %vm1072, 0, %v981
        %v1081 = vsel %vm1072, 0, %v988
        %v1082 = vsel %vm1072, 0, %v995
        %v1083 = vsel %vm1072, 0, %v1002
        %v1084 = vsel %vm1072, 0, %v1009
        %v1085 = vsel %vm1072, 0, %v1016
        %v1086 = vsel %vm1072, 0, %v1023
        %v1087 = vsel %vm1072, 0, %v1030
        %v1088 = vsel %vm1072, 0, %v1037
        %v1089 = vsel %vm1072, 0, %v1044
        %v1090 = vsel %vm1072, 0, %v1051
        %v1091 = vrot.slane %v930, 1
        %v1092 = vor.u32 %v927, %v1091
        %v1093 = vrot.slane %v937, 1
        %v1094 = vor.u32 %v934, %v1093
        %v1095 = vrot.slane %v944, 1
        %v1096 = vor.u32 %v941, %v1095
        %v1097 = vrot.slane %v951, 1
        %v1098 = vor.u32 %v948, %v1097
        %v1099 = vrot.slane %v958, 1
        %v1100 = vor.u32 %v955, %v1099
        %v1101 = vrot.slane %v965, 1
        %v1102 = vor.u32 %v962, %v1101
        %v1103 = vrot.slane %v972, 1
        %v1104 = vor.u32 %v969, %v1103
        %v1105 = vrot.slane %v979, 1
        %v1106 = vor.u32 %v976, %v1105
        %v1107 = vrot.slane %v986, 1
        %v1108 = vor.u32 %v983, %v1107
        %v1109 = vrot.slane %v993, 1
        %v1110 = vor.u32 %v990, %v1109
        %v1111 = vrot.slane %v1000, 1
        %v1112 = vor.u32 %v997, %v1111
        %v1113 = vrot.slane %v1007, 1
        %v1114 = vor.u32 %v1004, %v1113
        %v1115 = vrot.slane %v1014, 1
        %v1116 = vor.u32 %v1011, %v1115
        %v1117 = vrot.slane %v1021, 1
        %v1118 = vor.u32 %v1018, %v1117
        %v1119 = vrot.slane %v1028, 1
        %v1120 = vor.u32 %v1025, %v1119
        %v1121 = vrot.slane %v1035, 1
        %v1122 = vor.u32 %v1032, %v1121
        %v1123 = vrot.slane %v1042, 1
        %v1124 = vor.u32 %v1039, %v1123
        %v1125 = vrot.slane %v1049, 1
        %v1126 = vor.u32 %v1046, %v1125
        %vm1145 = vcmask 1047552
        %vm1146 = vsmask.f32 7424
        %vm1147 = vmand %vm1145, %vm1146
        %v1148 = vsel %vm1147, %v1092, 0
        %v1149 = vsel %vm1147, %v1094, 0
        %v1150 = vsel %vm1147, %v1096, 0
        %v1151 = vsel %vm1147, %v1098, 0
        %v1152 = vsel %vm1147, %v1100, 0
        %v1153 = vsel %vm1147, %v1102, 0
        %v1154 = vsel %vm1147, %v1104, 0
        %v1155 = vsel %vm1147, %v1106, 0
        %v1156 = vsel %vm1147, %v1108, 0
        %v1157 = vsel %vm1147, %v1110, 0
        %v1158 = vsel %vm1147, %v1112, 0
        %v1159 = vsel %vm1147, %v1114, 0
        %v1160 = vsel %vm1147, %v1116, 0
        %v1161 = vsel %vm1147, %v1118, 0
        %v1162 = vsel %vm1147, %v1120, 0
        %v1163 = vsel %vm1147, %v1122, 0
        %v1164 = vsel %vm1147, %v1124, 0
        %v1165 = vsel %vm1147, %v1126, 0
        %1182 = vrot.lane.b32.xlu0 %v908, 8
        %v1183 = vpop.permute.xlu0 %1182
        %1184 = vrot.lane.b32.xlu0 %v909, 8
        %v1185 = vpop.permute.xlu0 %1184
        %1186 = vrot.lane.b32.xlu0 %v910, 8
        %v1187 = vpop.permute.xlu0 %1186
        %1188 = vrot.lane.b32.xlu0 %v911, 8
        %v1189 = vpop.permute.xlu0 %1188
        %1190 = vrot.lane.b32.xlu0 %v912, 8
        %v1191 = vpop.permute.xlu0 %1190
        %1192 = vrot.lane.b32.xlu0 %v913, 8
        %v1193 = vpop.permute.xlu0 %1192
        %1194 = vrot.lane.b32.xlu0 %v914, 8
        %v1195 = vpop.permute.xlu0 %1194
        %1196 = vrot.lane.b32.xlu0 %v915, 8
        %v1197 = vpop.permute.xlu0 %1196
        %1198 = vrot.lane.b32.xlu0 %v916, 8
        %v1199 = vpop.permute.xlu0 %1198
        %1200 = vrot.lane.b32.xlu0 %v917, 8
        %v1201 = vpop.permute.xlu0 %1200
        %1202 = vrot.lane.b32.xlu0 %v918, 8
        %v1203 = vpop.permute.xlu0 %1202
        %1204 = vrot.lane.b32.xlu0 %v919, 8
        %v1205 = vpop.permute.xlu0 %1204
        %1206 = vrot.lane.b32.xlu0 %v920, 8
        %v1207 = vpop.permute.xlu0 %1206
        %1208 = vrot.lane.b32.xlu0 %v921, 8
        %v1209 = vpop.permute.xlu0 %1208
        %1210 = vrot.lane.b32.xlu0 %v922, 8
        %v1211 = vpop.permute.xlu0 %1210
        %1212 = vrot.lane.b32.xlu0 %v923, 8
        %v1213 = vpop.permute.xlu0 %1212
        %1230 = vrot.lane.b32.xlu0 %v1148, 16
        %v1231 = vpop.permute.xlu0 %1230
        %1232 = vrot.lane.b32.xlu0 %v1149, 16
        %v1233 = vpop.permute.xlu0 %1232
        %1234 = vrot.lane.b32.xlu0 %v1150, 16
        %v1235 = vpop.permute.xlu0 %1234
        %1236 = vrot.lane.b32.xlu0 %v1151, 16
        %v1237 = vpop.permute.xlu0 %1236
        %1238 = vrot.lane.b32.xlu0 %v1152, 16
        %v1239 = vpop.permute.xlu0 %1238
        %1240 = vrot.lane.b32.xlu0 %v1153, 16
        %v1241 = vpop.permute.xlu0 %1240
        %1242 = vrot.lane.b32.xlu0 %v1154, 16
        %v1243 = vpop.permute.xlu0 %1242
        %1244 = vrot.lane.b32.xlu0 %v1155, 16
        %v1245 = vpop.permute.xlu0 %1244
        %1246 = vrot.lane.b32.xlu0 %v1156, 16
        %v1247 = vpop.permute.xlu0 %1246
        %1248 = vrot.lane.b32.xlu0 %v1157, 16
        %v1249 = vpop.permute.xlu0 %1248
        %1250 = vrot.lane.b32.xlu0 %v1158, 16
        %v1251 = vpop.permute.xlu0 %1250
        %1252 = vrot.lane.b32.xlu0 %v1159, 16
        %v1253 = vpop.permute.xlu0 %1252
        %1254 = vrot.lane.b32.xlu0 %v1160, 16
        %v1255 = vpop.permute.xlu0 %1254
        %1256 = vrot.lane.b32.xlu0 %v1161, 16
        %v1257 = vpop.permute.xlu0 %1256
        %1258 = vrot.lane.b32.xlu0 %v1162, 16
        %v1259 = vpop.permute.xlu0 %1258
        %1260 = vrot.lane.b32.xlu0 %v1163, 16
        %v1261 = vpop.permute.xlu0 %1260
        %1278 = vrot.lane.b32.xlu0 %v1074, 24
        %v1279 = vpop.permute.xlu0 %1278
        %1280 = vrot.lane.b32.xlu0 %v1075, 24
        %v1281 = vpop.permute.xlu0 %1280
        %1282 = vrot.lane.b32.xlu0 %v1076, 24
        %v1283 = vpop.permute.xlu0 %1282
        %1284 = vrot.lane.b32.xlu0 %v1077, 24
        %v1285 = vpop.permute.xlu0 %1284
        %1286 = vrot.lane.b32.xlu0 %v1078, 24
        %v1287 = vpop.permute.xlu0 %1286
        %1288 = vrot.lane.b32.xlu0 %v1079, 24
        %v1289 = vpop.permute.xlu0 %1288
        %1290 = vrot.lane.b32.xlu0 %v1080, 24
        %v1291 = vpop.permute.xlu0 %1290
        %1292 = vrot.lane.b32.xlu0 %v1081, 24
        %v1293 = vpop.permute.xlu0 %1292
        %1294 = vrot.lane.b32.xlu0 %v1082, 24
        %v1295 = vpop.permute.xlu0 %1294
        %1296 = vrot.lane.b32.xlu0 %v1083, 24
        %v1297 = vpop.permute.xlu0 %1296
        %1298 = vrot.lane.b32.xlu0 %v1084, 24
        %v1299 = vpop.permute.xlu0 %1298
        %1300 = vrot.lane.b32.xlu0 %v1085, 24
        %v1301 = vpop.permute.xlu0 %1300
        %1302 = vrot.lane.b32.xlu0 %v1086, 24
        %v1303 = vpop.permute.xlu0 %1302
        %1304 = vrot.lane.b32.xlu0 %v1087, 24
        %v1305 = vpop.permute.xlu0 %1304
        %1306 = vrot.lane.b32.xlu0 %v1088, 24
        %v1307 = vpop.permute.xlu0 %1306
        %1308 = vrot.lane.b32.xlu0 %v1089, 24
        %v1309 = vpop.permute.xlu0 %1308
        %1311 = vrot.lane.b32.xlu0 %v909, 32
        %v1312 = vpop.permute.xlu0 %1311
        %1313 = vrot.lane.b32.xlu0 %v910, 32
        %v1314 = vpop.permute.xlu0 %1313
        %1315 = vrot.lane.b32.xlu0 %v911, 32
        %v1316 = vpop.permute.xlu0 %1315
        %1317 = vrot.lane.b32.xlu0 %v912, 32
        %v1318 = vpop.permute.xlu0 %1317
        %1319 = vrot.lane.b32.xlu0 %v913, 32
        %v1320 = vpop.permute.xlu0 %1319
        %1321 = vrot.lane.b32.xlu0 %v914, 32
        %v1322 = vpop.permute.xlu0 %1321
        %1323 = vrot.lane.b32.xlu0 %v915, 32
        %v1324 = vpop.permute.xlu0 %1323
        %1325 = vrot.lane.b32.xlu0 %v916, 32
        %v1326 = vpop.permute.xlu0 %1325
        %1327 = vrot.lane.b32.xlu0 %v917, 32
        %v1328 = vpop.permute.xlu0 %1327
        %1329 = vrot.lane.b32.xlu0 %v918, 32
        %v1330 = vpop.permute.xlu0 %1329
        %1331 = vrot.lane.b32.xlu0 %v919, 32
        %v1332 = vpop.permute.xlu0 %1331
        %1333 = vrot.lane.b32.xlu0 %v920, 32
        %v1334 = vpop.permute.xlu0 %1333
        %1335 = vrot.lane.b32.xlu0 %v921, 32
        %v1336 = vpop.permute.xlu0 %1335
        %1337 = vrot.lane.b32.xlu0 %v922, 32
        %v1338 = vpop.permute.xlu0 %1337
        %1339 = vrot.lane.b32.xlu0 %v923, 32
        %v1340 = vpop.permute.xlu0 %1339
        %1341 = vrot.lane.b32.xlu0 %v924, 32
        %v1342 = vpop.permute.xlu0 %1341
        %1344 = vrot.lane.b32.xlu0 %v1149, 40
        %v1345 = vpop.permute.xlu0 %1344
        %1346 = vrot.lane.b32.xlu0 %v1150, 40
        %v1347 = vpop.permute.xlu0 %1346
        %1348 = vrot.lane.b32.xlu0 %v1151, 40
        %v1349 = vpop.permute.xlu0 %1348
        %1350 = vrot.lane.b32.xlu0 %v1152, 40
        %v1351 = vpop.permute.xlu0 %1350
        %1352 = vrot.lane.b32.xlu0 %v1153, 40
        %v1353 = vpop.permute.xlu0 %1352
        %1354 = vrot.lane.b32.xlu0 %v1154, 40
        %v1355 = vpop.permute.xlu0 %1354
        %1356 = vrot.lane.b32.xlu0 %v1155, 40
        %v1357 = vpop.permute.xlu0 %1356
        %1358 = vrot.lane.b32.xlu0 %v1156, 40
        %v1359 = vpop.permute.xlu0 %1358
        %1360 = vrot.lane.b32.xlu0 %v1157, 40
        %v1361 = vpop.permute.xlu0 %1360
        %1362 = vrot.lane.b32.xlu0 %v1158, 40
        %v1363 = vpop.permute.xlu0 %1362
        %1364 = vrot.lane.b32.xlu0 %v1159, 40
        %v1365 = vpop.permute.xlu0 %1364
        %1366 = vrot.lane.b32.xlu0 %v1160, 40
        %v1367 = vpop.permute.xlu0 %1366
        %1368 = vrot.lane.b32.xlu0 %v1161, 40
        %v1369 = vpop.permute.xlu0 %1368
        %1370 = vrot.lane.b32.xlu0 %v1162, 40
        %v1371 = vpop.permute.xlu0 %1370
        %1372 = vrot.lane.b32.xlu0 %v1163, 40
        %v1373 = vpop.permute.xlu0 %1372
        %1374 = vrot.lane.b32.xlu0 %v1164, 40
        %v1375 = vpop.permute.xlu0 %1374
        %1377 = vrot.lane.b32.xlu0 %v1075, 48
        %v1378 = vpop.permute.xlu0 %1377
        %1379 = vrot.lane.b32.xlu0 %v1076, 48
        %v1380 = vpop.permute.xlu0 %1379
        %1381 = vrot.lane.b32.xlu0 %v1077, 48
        %v1382 = vpop.permute.xlu0 %1381
        %1383 = vrot.lane.b32.xlu0 %v1078, 48
        %v1384 = vpop.permute.xlu0 %1383
        %1385 = vrot.lane.b32.xlu0 %v1079, 48
        %v1386 = vpop.permute.xlu0 %1385
        %1387 = vrot.lane.b32.xlu0 %v1080, 48
        %v1388 = vpop.permute.xlu0 %1387
        %1389 = vrot.lane.b32.xlu0 %v1081, 48
        %v1390 = vpop.permute.xlu0 %1389
        %1391 = vrot.lane.b32.xlu0 %v1082, 48
        %v1392 = vpop.permute.xlu0 %1391
        %1393 = vrot.lane.b32.xlu0 %v1083, 48
        %v1394 = vpop.permute.xlu0 %1393
        %1395 = vrot.lane.b32.xlu0 %v1084, 48
        %v1396 = vpop.permute.xlu0 %1395
        %1397 = vrot.lane.b32.xlu0 %v1085, 48
        %v1398 = vpop.permute.xlu0 %1397
        %1399 = vrot.lane.b32.xlu0 %v1086, 48
        %v1400 = vpop.permute.xlu0 %1399
        %1401 = vrot.lane.b32.xlu0 %v1087, 48
        %v1402 = vpop.permute.xlu0 %1401
        %1403 = vrot.lane.b32.xlu0 %v1088, 48
        %v1404 = vpop.permute.xlu0 %1403
        %1405 = vrot.lane.b32.xlu0 %v1089, 48
        %v1406 = vpop.permute.xlu0 %1405
        %1407 = vrot.lane.b32.xlu0 %v1090, 48
        %v1408 = vpop.permute.xlu0 %1407
        %1410 = vrot.lane.b32.xlu0 %v910, 56
        %v1411 = vpop.permute.xlu0 %1410
        %1412 = vrot.lane.b32.xlu0 %v911, 56
        %v1413 = vpop.permute.xlu0 %1412
        %1414 = vrot.lane.b32.xlu0 %v912, 56
        %v1415 = vpop.permute.xlu0 %1414
        %1416 = vrot.lane.b32.xlu0 %v913, 56
        %v1417 = vpop.permute.xlu0 %1416
        %1418 = vrot.lane.b32.xlu0 %v914, 56
        %v1419 = vpop.permute.xlu0 %1418
        %1420 = vrot.lane.b32.xlu0 %v915, 56
        %v1421 = vpop.permute.xlu0 %1420
        %1422 = vrot.lane.b32.xlu0 %v916, 56
        %v1423 = vpop.permute.xlu0 %1422
        %1424 = vrot.lane.b32.xlu0 %v917, 56
        %v1425 = vpop.permute.xlu0 %1424
        %1426 = vrot.lane.b32.xlu0 %v918, 56
        %v1427 = vpop.permute.xlu0 %1426
        %1428 = vrot.lane.b32.xlu0 %v919, 56
        %v1429 = vpop.permute.xlu0 %1428
        %1430 = vrot.lane.b32.xlu0 %v920, 56
        %v1431 = vpop.permute.xlu0 %1430
        %1432 = vrot.lane.b32.xlu0 %v921, 56
        %v1433 = vpop.permute.xlu0 %1432
        %1434 = vrot.lane.b32.xlu0 %v922, 56
        %v1435 = vpop.permute.xlu0 %1434
        %1436 = vrot.lane.b32.xlu0 %v923, 56
        %v1437 = vpop.permute.xlu0 %1436
        %1438 = vrot.lane.b32.xlu0 %v924, 56
        %v1439 = vpop.permute.xlu0 %1438
        %1440 = vrot.lane.b32.xlu0 %v925, 56
        %v1441 = vpop.permute.xlu0 %1440
        %1443 = vrot.lane.b32.xlu0 %v1150, 64
        %v1444 = vpop.permute.xlu0 %1443
        %1445 = vrot.lane.b32.xlu0 %v1151, 64
        %v1446 = vpop.permute.xlu0 %1445
        %1447 = vrot.lane.b32.xlu0 %v1152, 64
        %v1448 = vpop.permute.xlu0 %1447
        %1449 = vrot.lane.b32.xlu0 %v1153, 64
        %v1450 = vpop.permute.xlu0 %1449
        %1451 = vrot.lane.b32.xlu0 %v1154, 64
        %v1452 = vpop.permute.xlu0 %1451
        %1453 = vrot.lane.b32.xlu0 %v1155, 64
        %v1454 = vpop.permute.xlu0 %1453
        %1455 = vrot.lane.b32.xlu0 %v1156, 64
        %v1456 = vpop.permute.xlu0 %1455
        %1457 = vrot.lane.b32.xlu0 %v1157, 64
        %v1458 = vpop.permute.xlu0 %1457
        %1459 = vrot.lane.b32.xlu0 %v1158, 64
        %v1460 = vpop.permute.xlu0 %1459
        %1461 = vrot.lane.b32.xlu0 %v1159, 64
        %v1462 = vpop.permute.xlu0 %1461
        %1463 = vrot.lane.b32.xlu0 %v1160, 64
        %v1464 = vpop.permute.xlu0 %1463
        %1465 = vrot.lane.b32.xlu0 %v1161, 64
        %v1466 = vpop.permute.xlu0 %1465
        %1467 = vrot.lane.b32.xlu0 %v1162, 64
        %v1468 = vpop.permute.xlu0 %1467
        %1469 = vrot.lane.b32.xlu0 %v1163, 64
        %v1470 = vpop.permute.xlu0 %1469
        %1471 = vrot.lane.b32.xlu0 %v1164, 64
        %v1472 = vpop.permute.xlu0 %1471
        %1473 = vrot.lane.b32.xlu0 %v1165, 64
        %v1474 = vpop.permute.xlu0 %1473
        %vm1475 = vcmask 64512
        %v1478 = vsel %vm1475, %v1073, %v1183
        %v1481 = vsel %vm1475, %v1074, %v1185
        %v1484 = vsel %vm1475, %v1075, %v1187
        %v1487 = vsel %vm1475, %v1076, %v1189
        %v1490 = vsel %vm1475, %v1077, %v1191
        %v1493 = vsel %vm1475, %v1078, %v1193
        %v1496 = vsel %vm1475, %v1079, %v1195
        %v1499 = vsel %vm1475, %v1080, %v1197
        %v1502 = vsel %vm1475, %v1081, %v1199
        %v1505 = vsel %vm1475, %v1082, %v1201
        %v1508 = vsel %vm1475, %v1083, %v1203
        %v1511 = vsel %vm1475, %v1084, %v1205
        %v1514 = vsel %vm1475, %v1085, %v1207
        %v1517 = vsel %vm1475, %v1086, %v1209
        %v1520 = vsel %vm1475, %v1087, %v1211
        %v1523 = vsel %vm1475, %v1088, %v1213
        %v1525 = vsel %vm311, %v1478, %v1231
        %v1527 = vsel %vm311, %v1481, %v1233
        %v1529 = vsel %vm311, %v1484, %v1235
        %v1531 = vsel %vm311, %v1487, %v1237
        %v1533 = vsel %vm311, %v1490, %v1239
        %v1535 = vsel %vm311, %v1493, %v1241
        %v1537 = vsel %vm311, %v1496, %v1243
        %v1539 = vsel %vm311, %v1499, %v1245
        %v1541 = vsel %vm311, %v1502, %v1247
        %v1543 = vsel %vm311, %v1505, %v1249
        %v1545 = vsel %vm311, %v1508, %v1251
        %v1547 = vsel %vm311, %v1511, %v1253
        %v1549 = vsel %vm311, %v1514, %v1255
        %v1551 = vsel %vm311, %v1517, %v1257
        %v1553 = vsel %vm311, %v1520, %v1259
        %v1555 = vsel %vm311, %v1523, %v1261
        %vm1556 = vcmask 195584
        %v1558 = vsel %vm1556, %v1525, %v1279
        %v1560 = vsel %vm1556, %v1527, %v1281
        %v1562 = vsel %vm1556, %v1529, %v1283
        %v1564 = vsel %vm1556, %v1531, %v1285
        %v1566 = vsel %vm1556, %v1533, %v1287
        %v1568 = vsel %vm1556, %v1535, %v1289
        %v1570 = vsel %vm1556, %v1537, %v1291
        %v1572 = vsel %vm1556, %v1539, %v1293
        %v1574 = vsel %vm1556, %v1541, %v1295
        %v1576 = vsel %vm1556, %v1543, %v1297
        %v1578 = vsel %vm1556, %v1545, %v1299
        %v1580 = vsel %vm1556, %v1547, %v1301
        %v1582 = vsel %vm1556, %v1549, %v1303
        %v1584 = vsel %vm1556, %v1551, %v1305
        %v1586 = vsel %vm1556, %v1553, %v1307
        %v1588 = vsel %vm1556, %v1555, %v1309
        %vm1589 = vcmask 261120
        %v1591 = vsel %vm1589, %v1558, %v1312
        %v1593 = vsel %vm1589, %v1560, %v1314
        %v1595 = vsel %vm1589, %v1562, %v1316
        %v1597 = vsel %vm1589, %v1564, %v1318
        %v1599 = vsel %vm1589, %v1566, %v1320
        %v1601 = vsel %vm1589, %v1568, %v1322
        %v1603 = vsel %vm1589, %v1570, %v1324
        %v1605 = vsel %vm1589, %v1572, %v1326
        %v1607 = vsel %vm1589, %v1574, %v1328
        %v1609 = vsel %vm1589, %v1576, %v1330
        %v1611 = vsel %vm1589, %v1578, %v1332
        %v1613 = vsel %vm1589, %v1580, %v1334
        %v1615 = vsel %vm1589, %v1582, %v1336
        %v1617 = vsel %vm1589, %v1584, %v1338
        %v1619 = vsel %vm1589, %v1586, %v1340
        %v1621 = vsel %vm1589, %v1588, %v1342
        %vm1622 = vcmask 326656
        %v1624 = vsel %vm1622, %v1591, %v1345
        %v1626 = vsel %vm1622, %v1593, %v1347
        %v1628 = vsel %vm1622, %v1595, %v1349
        %v1630 = vsel %vm1622, %v1597, %v1351
        %v1632 = vsel %vm1622, %v1599, %v1353
        %v1634 = vsel %vm1622, %v1601, %v1355
        %v1636 = vsel %vm1622, %v1603, %v1357
        %v1638 = vsel %vm1622, %v1605, %v1359
        %v1640 = vsel %vm1622, %v1607, %v1361
        %v1642 = vsel %vm1622, %v1609, %v1363
        %v1644 = vsel %vm1622, %v1611, %v1365
        %v1646 = vsel %vm1622, %v1613, %v1367
        %v1648 = vsel %vm1622, %v1615, %v1369
        %v1650 = vsel %vm1622, %v1617, %v1371
        %v1652 = vsel %vm1622, %v1619, %v1373
        %v1654 = vsel %vm1622, %v1621, %v1375
        %vm1655 = vcmask 392192
        %v1657 = vsel %vm1655, %v1624, %v1378
        %v1659 = vsel %vm1655, %v1626, %v1380
        %v1661 = vsel %vm1655, %v1628, %v1382
        %v1663 = vsel %vm1655, %v1630, %v1384
        %v1665 = vsel %vm1655, %v1632, %v1386
        %v1667 = vsel %vm1655, %v1634, %v1388
        %v1669 = vsel %vm1655, %v1636, %v1390
        %v1671 = vsel %vm1655, %v1638, %v1392
        %v1673 = vsel %vm1655, %v1640, %v1394
        %v1675 = vsel %vm1655, %v1642, %v1396
        %v1677 = vsel %vm1655, %v1644, %v1398
        %v1679 = vsel %vm1655, %v1646, %v1400
        %v1681 = vsel %vm1655, %v1648, %v1402
        %v1683 = vsel %vm1655, %v1650, %v1404
        %v1685 = vsel %vm1655, %v1652, %v1406
        %v1687 = vsel %vm1655, %v1654, %v1408
        %vm1688 = vcmask 457728
        %v1690 = vsel %vm1688, %v1657, %v1411
        %v1692 = vsel %vm1688, %v1659, %v1413
        %v1694 = vsel %vm1688, %v1661, %v1415
        %v1696 = vsel %vm1688, %v1663, %v1417
        %v1698 = vsel %vm1688, %v1665, %v1419
        %v1700 = vsel %vm1688, %v1667, %v1421
        %v1702 = vsel %vm1688, %v1669, %v1423
        %v1704 = vsel %vm1688, %v1671, %v1425
        %v1706 = vsel %vm1688, %v1673, %v1427
        %v1708 = vsel %vm1688, %v1675, %v1429
        %v1710 = vsel %vm1688, %v1677, %v1431
        %v1712 = vsel %vm1688, %v1679, %v1433
        %v1714 = vsel %vm1688, %v1681, %v1435
        %v1716 = vsel %vm1688, %v1683, %v1437
        %v1718 = vsel %vm1688, %v1685, %v1439
        %v1720 = vsel %vm1688, %v1687, %v1441
        %vm1721 = vcmask 523264
        %v1723 = vsel %vm1721, %v1690, %v1444
        %v1725 = vsel %vm1721, %v1692, %v1446
        %v1727 = vsel %vm1721, %v1694, %v1448
        %v1729 = vsel %vm1721, %v1696, %v1450
        %v1731 = vsel %vm1721, %v1698, %v1452
        %v1733 = vsel %vm1721, %v1700, %v1454
        %v1735 = vsel %vm1721, %v1702, %v1456
        %v1737 = vsel %vm1721, %v1704, %v1458
        %v1739 = vsel %vm1721, %v1706, %v1460
        %v1741 = vsel %vm1721, %v1708, %v1462
        %v1743 = vsel %vm1721, %v1710, %v1464
        %v1745 = vsel %vm1721, %v1712, %v1466
        %v1747 = vsel %vm1721, %v1714, %v1468
        %v1749 = vsel %vm1721, %v1716, %v1470
        %v1751 = vsel %vm1721, %v1718, %v1472
        %v1753 = vsel %vm1721, %v1720, %v1474
        %v1754 = vld [vmem:[%s3] sm:$0xf]
        %v1755 = vld [vmem:[%s3 + $0x4] sm:$0xf]
        %v1756 = vld [vmem:[%s3 + $0x8] sm:$0xf]
        %v1757 = vld [vmem:[%s3 + $0xc] sm:$0xf]
        %v1758 = vld [vmem:[%s3 + $0x10] sm:$0xf]
        %v1759 = vld [vmem:[%s3 + $0x14] sm:$0xf]
        %v1760 = vld [vmem:[%s3 + $0x18] sm:$0xf]
        %v1761 = vld [vmem:[%s3 + $0x1c] sm:$0xf]
        %v1762 = vld [vmem:[%s3 + $0x20] sm:$0xf]
        %v1763 = vld [vmem:[%s4] sm:$0x1]
        %v1765 = vlaneseq
        %v1766 = vshrl.u32 %v1765, 7
        %v1767 = vsub.s32 0, %v1766
        %v1768 = vrot.slane %v1763, %v1767
        %v1779 = vunpack.c.l.b16 %v1754
        %v1780 = vunpack.c.l.b16 %v1755
        %v1781 = vunpack.c.l.b16 %v1756
        %v1782 = vunpack.c.l.b16 %v1757
        %v1783 = vunpack.c.l.b16 %v1758
        %v1784 = vunpack.c.l.b16 %v1759
        %v1785 = vunpack.c.l.b16 %v1760
        %v1786 = vunpack.c.l.b16 %v1761
        %v1787 = vunpack.c.l.b16 %v1762
        %v1788 = vpack.c.b16 %v1780, %v1779
        %v1789 = vpack.c.b16 %v1782, %v1781
        %v1790 = vpack.c.b16 %v1784, %v1783
        %v1791 = vpack.c.b16 %v1786, %v1785
        %v1792 = vpack.c.b16 %v1787, %v1787
        %vm1797 = vcmask 588800
        %v1798 = vsel %vm1797, %v1723, 0
        %v1800 = vsel %vm1797, %v1725, 0
        %v1802 = vsel %vm1797, %v1727, 0
        %v1804 = vsel %vm1797, %v1729, 0
        %v1806 = vsel %vm1797, %v1731, 0
        %v1808 = vsel %vm1797, %v1733, 0
        %v1810 = vsel %vm1797, %v1735, 0
        %v1812 = vsel %vm1797, %v1737, 0
        %v1814 = vsel %vm1797, %v1739, 0
        %v1816 = vsel %vm1797, %v1741, 0
        %v1818 = vsel %vm1797, %v1743, 0
        %v1820 = vsel %vm1797, %v1745, 0
        %v1822 = vsel %vm1797, %v1747, 0
        %v1824 = vsel %vm1797, %v1749, 0
        %v1826 = vsel %vm1797, %v1751, 0
        %v1828 = vsel %vm1797, %v1753, 0
        %vm1830 = vcmask 1043456
        %v1832 = vsel %vm1830, %v1792, 0
        %1834 = vmatprep.subr.bf16.mxu0 0
        %1835 = vmatpush1.bf16.msra.mxu0 %v1788
        %1836 = vmatprep.subr.bf16.mxu0 0
        %1837 = vmatpush1.bf16.msra.mxu0 %v1789
        %1838 = vmatprep.subr.bf16.mxu0 0
        %1839 = vmatpush1.bf16.msra.mxu0 %v1790
        %1840 = vmatprep.subr.bf16.mxu0 0
        %1841 = vmatpush1.bf16.msra.mxu0 %v1791
        %1842 = vmatprep.subr.bf16.mxu0 0
        %1843 = vmatpush1.bf16.msra.mxu0 %v1832
        %1844 = vmatprep.subr.bf16.mxu0 0
        %1845 = vmatpush1.bf16.msra.mxu0 0
        %1846 = vmatprep.subr.bf16.mxu0 0
        %1847 = vmatpush1.bf16.msra.mxu0 0
        %1848 = vmatprep.subr.bf16.mxu0 0
        %1849 = vmatpush1.bf16.msra.mxu0 0
        %1850 = vmatprep.subr.bf16.mxu0 0
        %1851 = vmatpush1.bf16.msra.mxu0 0
        %1852 = vmatprep.subr.bf16.mxu0 0
        %1853 = vmatpush1.bf16.msra.mxu0 0
        %1854 = vmatprep.subr.bf16.mxu0 0
        %1855 = vmatpush1.bf16.msra.mxu0 0
        %1856 = vmatprep.subr.bf16.mxu0 0
        %1857 = vmatpush1.bf16.msra.mxu0 0
        %1858 = vmatprep.subr.bf16.mxu0 0
        %1859 = vmatpush1.bf16.msra.mxu0 0
        %1860 = vmatprep.subr.bf16.mxu0 0
        %1861 = vmatpush1.bf16.msra.mxu0 0
        %1862 = vmatprep.subr.bf16.mxu0 0
        %1863 = vmatpush1.bf16.msra.mxu0 0
        %1864 = vmatprep.subr.bf16.mxu0 0
        %1865 = vmatpush1.bf16.msra.mxu0 0
        %1866 = vmatprep.mubr.bf16.mxu0 0
        %1867 = vmatmul.mubr.bf16.gmra.mrb[0].mxu0 %v1798
        %v1868 = vpop.f32.mrb[0].mxu0
        %v1869 = vadd.f32 %v1768, %v1868
        %v1870 = vpop.f32.mrb[0].mxu0
        %v1871 = vpop.f32.mrb[0].mxu0
        %v1872 = vadd.f32 %v1768, %v1871
        %v1873 = vpop.f32.mrb[0].mxu0
        %1874 = vmatprep.mubr.bf16.mxu0 0
        %1875 = vmatmul.mubr.bf16.gmra.mrb[0].mxu0 %v1800
        %v1876 = vpop.f32.mrb[0].mxu0
        %v1877 = vadd.f32 %v1768, %v1876
        %v1878 = vpop.f32.mrb[0].mxu0
        %v1879 = vpop.f32.mrb[0].mxu0
        %v1880 = vadd.f32 %v1768, %v1879
        %v1881 = vpop.f32.mrb[0].mxu0
        %1882 = vmatprep.mubr.bf16.mxu0 0
        %1883 = vmatmul.mubr.bf16.gmra.mrb[0].mxu0 %v1802
        %v1884 = vpop.f32.mrb[0].mxu0
        %v1885 = vadd.f32 %v1768, %v1884
        %v1886 = vpop.f32.mrb[0].mxu0
        %v1887 = vpop.f32.mrb[0].mxu0
        %v1888 = vadd.f32 %v1768, %v1887
        %v1889 = vpop.f32.mrb[0].mxu0
        %1890 = vmatprep.mubr.bf16.mxu0 0
        %1891 = vmatmul.mubr.bf16.gmra.mrb[0].mxu0 %v1804
        %v1892 = vpop.f32.mrb[0].mxu0
        %v1893 = vadd.f32 %v1768, %v1892
        %v1894 = vpop.f32.mrb[0].mxu0
        %v1895 = vpop.f32.mrb[0].mxu0
        %v1896 = vadd.f32 %v1768, %v1895
        %v1897 = vpop.f32.mrb[0].mxu0
        %1898 = vmatprep.mubr.bf16.mxu0 0
        %1899 = vmatmul.mubr.bf16.gmra.mrb[0].mxu0 %v1806
        %v1900 = vpop.f32.mrb[0].mxu0
        %v1901 = vadd.f32 %v1768, %v1900
        %v1902 = vpop.f32.mrb[0].mxu0
        %v1903 = vpop.f32.mrb[0].mxu0
        %v1904 = vadd.f32 %v1768, %v1903
        %v1905 = vpop.f32.mrb[0].mxu0
        %1906 = vmatprep.mubr.bf16.mxu0 0
        %1907 = vmatmul.mubr.bf16.gmra.mrb[0].mxu0 %v1808
        %v1908 = vpop.f32.mrb[0].mxu0
        %v1909 = vadd.f32 %v1768, %v1908
        %v1910 = vpop.f32.mrb[0].mxu0
        %v1911 = vpop.f32.mrb[0].mxu0
        %v1912 = vadd.f32 %v1768, %v1911
        %v1913 = vpop.f32.mrb[0].mxu0
        %1914 = vmatprep.mubr.bf16.mxu0 0
        %1915 = vmatmul.mubr.bf16.gmra.mrb[0].mxu0 %v1810
        %v1916 = vpop.f32.mrb[0].mxu0
        %v1917 = vadd.f32 %v1768, %v1916
        %v1918 = vpop.f32.mrb[0].mxu0
        %v1919 = vpop.f32.mrb[0].mxu0
        %v1920 = vadd.f32 %v1768, %v1919
        %v1921 = vpop.f32.mrb[0].mxu0
        %1922 = vmatprep.mubr.bf16.mxu0 0
        %1923 = vmatmul.mubr.bf16.gmra.mrb[0].mxu0 %v1812
        %v1924 = vpop.f32.mrb[0].mxu0
        %v1925 = vadd.f32 %v1768, %v1924
        %v1926 = vpop.f32.mrb[0].mxu0
        %v1927 = vpop.f32.mrb[0].mxu0
        %v1928 = vadd.f32 %v1768, %v1927
        %v1929 = vpop.f32.mrb[0].mxu0
        %1930 = vmatprep.mubr.bf16.mxu0 0
        %1931 = vmatmul.mubr.bf16.gmra.mrb[0].mxu0 %v1814
        %v1932 = vpop.f32.mrb[0].mxu0
        %v1933 = vadd.f32 %v1768, %v1932
        %v1934 = vpop.f32.mrb[0].mxu0
        %v1935 = vpop.f32.mrb[0].mxu0
        %v1936 = vadd.f32 %v1768, %v1935
        %v1937 = vpop.f32.mrb[0].mxu0
        %1938 = vmatprep.mubr.bf16.mxu0 0
        %1939 = vmatmul.mubr.bf16.gmra.mrb[0].mxu0 %v1816
        %v1940 = vpop.f32.mrb[0].mxu0
        %v1941 = vadd.f32 %v1768, %v1940
        %v1942 = vpop.f32.mrb[0].mxu0
        %v1943 = vpop.f32.mrb[0].mxu0
        %v1944 = vadd.f32 %v1768, %v1943
        %v1945 = vpop.f32.mrb[0].mxu0
        %1946 = vmatprep.mubr.bf16.mxu0 0
        %1947 = vmatmul.mubr.bf16.gmra.mrb[0].mxu0 %v1818
        %v1948 = vpop.f32.mrb[0].mxu0
        %v1949 = vadd.f32 %v1768, %v1948
        %v1950 = vpop.f32.mrb[0].mxu0
        %v1951 = vpop.f32.mrb[0].mxu0
        %v1952 = vadd.f32 %v1768, %v1951
        %v1953 = vpop.f32.mrb[0].mxu0
        %1954 = vmatprep.mubr.bf16.mxu0 0
        %1955 = vmatmul.mubr.bf16.gmra.mrb[0].mxu0 %v1820
        %v1956 = vpop.f32.mrb[0].mxu0
        %v1957 = vadd.f32 %v1768, %v1956
        %v1958 = vpop.f32.mrb[0].mxu0
        %v1959 = vpop.f32.mrb[0].mxu0
        %v1960 = vadd.f32 %v1768, %v1959
        %v1961 = vpop.f32.mrb[0].mxu0
        %1962 = vmatprep.mubr.bf16.mxu0 0
        %1963 = vmatmul.mubr.bf16.gmra.mrb[0].mxu0 %v1822
        %v1964 = vpop.f32.mrb[0].mxu0
        %v1965 = vadd.f32 %v1768, %v1964
        %v1966 = vpop.f32.mrb[0].mxu0
        %v1967 = vpop.f32.mrb[0].mxu0
        %v1968 = vadd.f32 %v1768, %v1967
        %v1969 = vpop.f32.mrb[0].mxu0
        %1970 = vmatprep.mubr.bf16.mxu0 0
        %1971 = vmatmul.mubr.bf16.gmra.mrb[0].mxu0 %v1824
        %v1972 = vpop.f32.mrb[0].mxu0
        %v1973 = vadd.f32 %v1768, %v1972
        %v1974 = vpop.f32.mrb[0].mxu0
        %v1975 = vpop.f32.mrb[0].mxu0
        %v1976 = vadd.f32 %v1768, %v1975
        %v1977 = vpop.f32.mrb[0].mxu0
        %1978 = vmatprep.mubr.bf16.mxu0 0
        %1979 = vmatmul.mubr.bf16.gmra.mrb[0].mxu0 %v1826
        %v1980 = vpop.f32.mrb[0].mxu0
        %v1981 = vadd.f32 %v1768, %v1980
        %v1982 = vpop.f32.mrb[0].mxu0
        %v1983 = vpop.f32.mrb[0].mxu0
        %v1984 = vadd.f32 %v1768, %v1983
        %v1985 = vpop.f32.mrb[0].mxu0
        %1986 = vmatprep.mubr.bf16.mxu0 0
        %1987 = vmatmul.mubr.bf16.gmra.mrb[0].mxu0 %v1828
        %v1988 = vpop.f32.mrb[0].mxu0
        %v1989 = vadd.f32 %v1768, %v1988
        %v1990 = vpop.f32.mrb[0].mxu0
        %v1991 = vpop.f32.mrb[0].mxu0
        %v1992 = vadd.f32 %v1768, %v1991
        %v1993 = vpop.f32.mrb[0].mxu0
        %1994 = vdwg.mxu0
        %v1995 = vmul.f32 %v1869, 0.5
        %v1996 = vmul.f32 %v1872, 0.5
        %v1997 = vmul.f32 %v1877, 0.5
        %v1998 = vmul.f32 %v1880, 0.5
        %v1999 = vmul.f32 %v1885, 0.5
        %v2000 = vmul.f32 %v1888, 0.5
        %v2001 = vmul.f32 %v1893, 0.5
        %v2002 = vmul.f32 %v1896, 0.5
        %v2003 = vmul.f32 %v1901, 0.5
        %v2004 = vmul.f32 %v1904, 0.5
        %v2005 = vmul.f32 %v1909, 0.5
        %v2006 = vmul.f32 %v1912, 0.5
        %v2007 = vmul.f32 %v1917, 0.5
        %v2008 = vmul.f32 %v1920, 0.5
        %v2009 = vmul.f32 %v1925, 0.5
        %v2010 = vmul.f32 %v1928, 0.5
        %v2011 = vmul.f32 %v1933, 0.5
        %v2012 = vmul.f32 %v1936, 0.5
        %v2013 = vmul.f32 %v1941, 0.5
        %v2014 = vmul.f32 %v1944, 0.5
        %v2015 = vmul.f32 %v1949, 0.5
        %v2016 = vmul.f32 %v1952, 0.5
        %v2017 = vmul.f32 %v1957, 0.5
        %v2018 = vmul.f32 %v1960, 0.5
        %v2019 = vmul.f32 %v1965, 0.5
        %v2020 = vmul.f32 %v1968, 0.5
        %v2021 = vmul.f32 %v1973, 0.5
        %v2022 = vmul.f32 %v1976, 0.5
        %v2023 = vmul.f32 %v1981, 0.5
        %v2024 = vmul.f32 %v1984, 0.5
        %v2025 = vmul.f32 %v1989, 0.5
        %v2026 = vmul.f32 %v1992, 0.5
        %v2027 = vtanh.pop %v1995
        %v2028 = vtanh.pop %v1996
        %v2029 = vtanh.pop %v1997
        %v2030 = vtanh.pop %v1998
        %v2031 = vtanh.pop %v1999
        %v2032 = vtanh.pop %v2000
        %v2033 = vtanh.pop %v2001
        %v2034 = vtanh.pop %v2002
        %v2035 = vtanh.pop %v2003
        %v2036 = vtanh.pop %v2004
        %v2037 = vtanh.pop %v2005
        %v2038 = vtanh.pop %v2006
        %v2039 = vtanh.pop %v2007
        %v2040 = vtanh.pop %v2008
        %v2041 = vtanh.pop %v2009
        %v2042 = vtanh.pop %v2010
        %v2043 = vtanh.pop %v2011
        %v2044 = vtanh.pop %v2012
        %v2045 = vtanh.pop %v2013
        %v2046 = vtanh.pop %v2014
        %v2047 = vtanh.pop %v2015
        %v2048 = vtanh.pop %v2016
        %v2049 = vtanh.pop %v2017
        %v2050 = vtanh.pop %v2018
        %v2051 = vtanh.pop %v2019
        %v2052 = vtanh.pop %v2020
        %v2053 = vtanh.pop %v2021
        %v2054 = vtanh.pop %v2022
        %v2055 = vtanh.pop %v2023
        %v2056 = vtanh.pop %v2024
        %v2057 = vtanh.pop %v2025
        %v2058 = vtanh.pop %v2026
        %v2059 = vadd.f32 %v2027, 1.0
        %v2060 = vadd.f32 %v2028, 1.0
        %v2061 = vadd.f32 %v2029, 1.0
        %v2062 = vadd.f32 %v2030, 1.0
        %v2063 = vadd.f32 %v2031, 1.0
        %v2064 = vadd.f32 %v2032, 1.0
        %v2065 = vadd.f32 %v2033, 1.0
        %v2066 = vadd.f32 %v2034, 1.0
        %v2067 = vadd.f32 %v2035, 1.0
        %v2068 = vadd.f32 %v2036, 1.0
        %v2069 = vadd.f32 %v2037, 1.0
        %v2070 = vadd.f32 %v2038, 1.0
        %v2071 = vadd.f32 %v2039, 1.0
        %v2072 = vadd.f32 %v2040, 1.0
        %v2073 = vadd.f32 %v2041, 1.0
        %v2074 = vadd.f32 %v2042, 1.0
        %v2075 = vadd.f32 %v2043, 1.0
        %v2076 = vadd.f32 %v2044, 1.0
        %v2077 = vadd.f32 %v2045, 1.0
        %v2078 = vadd.f32 %v2046, 1.0
        %v2079 = vadd.f32 %v2047, 1.0
        %v2080 = vadd.f32 %v2048, 1.0
        %v2081 = vadd.f32 %v2049, 1.0
        %v2082 = vadd.f32 %v2050, 1.0
        %v2083 = vadd.f32 %v2051, 1.0
        %v2084 = vadd.f32 %v2052, 1.0
        %v2085 = vadd.f32 %v2053, 1.0
        %v2086 = vadd.f32 %v2054, 1.0
        %v2087 = vadd.f32 %v2055, 1.0
        %v2088 = vadd.f32 %v2056, 1.0
        %v2089 = vadd.f32 %v2057, 1.0
        %v2090 = vadd.f32 %v2058, 1.0
        %v2091 = vmul.f32 %v1995, %v2059
        %v2092 = vmul.f32 %v1996, %v2060
        %v2093 = vmul.f32 %v1997, %v2061
        %v2094 = vmul.f32 %v1998, %v2062
        %v2095 = vmul.f32 %v1999, %v2063
        %v2096 = vmul.f32 %v2000, %v2064
        %v2097 = vmul.f32 %v2001, %v2065
        %v2098 = vmul.f32 %v2002, %v2066
        %v2099 = vmul.f32 %v2003, %v2067
        %v2100 = vmul.f32 %v2004, %v2068
        %v2101 = vmul.f32 %v2005, %v2069
        %v2102 = vmul.f32 %v2006, %v2070
        %v2103 = vmul.f32 %v2007, %v2071
        %v2104 = vmul.f32 %v2008, %v2072
        %v2105 = vmul.f32 %v2009, %v2073
        %v2106 = vmul.f32 %v2010, %v2074
        %v2107 = vmul.f32 %v2011, %v2075
        %v2108 = vmul.f32 %v2012, %v2076
        %v2109 = vmul.f32 %v2013, %v2077
        %v2110 = vmul.f32 %v2014, %v2078
        %v2111 = vmul.f32 %v2015, %v2079
        %v2112 = vmul.f32 %v2016, %v2080
        %v2113 = vmul.f32 %v2017, %v2081
        %v2114 = vmul.f32 %v2018, %v2082
        %v2115 = vmul.f32 %v2019, %v2083
        %v2116 = vmul.f32 %v2020, %v2084
        %v2117 = vmul.f32 %v2021, %v2085
        %v2118 = vmul.f32 %v2022, %v2086
        %v2119 = vmul.f32 %v2023, %v2087
        %v2120 = vmul.f32 %v2024, %v2088
        %v2121 = vmul.f32 %v2025, %v2089
        %v2122 = vmul.f32 %v2026, %v2090
        %v2123 = vadd.f32 %v2091, %v244
        %v2124 = vadd.f32 %v2092, %v245
        %v2125 = vadd.f32 %v2093, %v246
        %v2126 = vadd.f32 %v2094, %v247
        %v2127 = vadd.f32 %v2095, %v248
        %v2128 = vadd.f32 %v2096, %v249
        %v2129 = vadd.f32 %v2097, %v250
        %v2130 = vadd.f32 %v2098, %v251
        %v2131 = vadd.f32 %v2099, %v252
        %v2132 = vadd.f32 %v2100, %v253
        %v2133 = vadd.f32 %v2101, %v254
        %v2134 = vadd.f32 %v2102, %v255
        %v2135 = vadd.f32 %v2103, %v256
        %v2136 = vadd.f32 %v2104, %v257
        %v2137 = vadd.f32 %v2105, %v258
        %v2138 = vadd.f32 %v2106, %v259
        %v2139 = vadd.f32 %v2107, %v260
        %v2140 = vadd.f32 %v2108, %v261
        %v2141 = vadd.f32 %v2109, %v262
        %v2142 = vadd.f32 %v2110, %v263
        %v2143 = vadd.f32 %v2111, %v264
        %v2144 = vadd.f32 %v2112, %v265
        %v2145 = vadd.f32 %v2113, %v266
        %v2146 = vadd.f32 %v2114, %v267
        %v2147 = vadd.f32 %v2115, %v268
        %v2148 = vadd.f32 %v2116, %v269
        %v2149 = vadd.f32 %v2117, %v270
        %v2150 = vadd.f32 %v2118, %v271
        %v2151 = vadd.f32 %v2119, %v272
        %v2152 = vadd.f32 %v2120, %v273
        %v2153 = vadd.f32 %v2121, %v274
        %v2154 = vadd.f32 %v2122, %v275
        %2155 = vst.msk [vmem:[%s231] sm:$0xff] %vm311, %v2123
        %2156 = vst.msk [vmem:[%s231 + $0x8] sm:$0xff] %vm311, %v2124
        %2157 = vst.msk [vmem:[%s231 + $0x10] sm:$0xff] %vm311, %v2125
        %2158 = vst.msk [vmem:[%s231 + $0x18] sm:$0xff] %vm311, %v2126
        %2159 = vst.msk [vmem:[%s231 + $0x20] sm:$0xff] %vm311, %v2127
        %2160 = vst.msk [vmem:[%s231 + $0x28] sm:$0xff] %vm311, %v2128
        %2161 = vst.msk [vmem:[%s231 + $0x30] sm:$0xff] %vm311, %v2129
        %2162 = vst.msk [vmem:[%s231 + $0x38] sm:$0xff] %vm311, %v2130
        %2163 = vst.msk [vmem:[%s231 + $0x40] sm:$0xff] %vm311, %v2131
        %2164 = vst.msk [vmem:[%s231 + $0x48] sm:$0xff] %vm311, %v2132
        %2165 = vst.msk [vmem:[%s231 + $0x50] sm:$0xff] %vm311, %v2133
        %2166 = vst.msk [vmem:[%s231 + $0x58] sm:$0xff] %vm311, %v2134
        %2167 = vst.msk [vmem:[%s231 + $0x60] sm:$0xff] %vm311, %v2135
        %2168 = vst.msk [vmem:[%s231 + $0x68] sm:$0xff] %vm311, %v2136
        %2169 = vst.msk [vmem:[%s231 + $0x70] sm:$0xff] %vm311, %v2137
        %2170 = vst.msk [vmem:[%s231 + $0x78] sm:$0xff] %vm311, %v2138
        %2171 = vst.msk [vmem:[%s231 + $0x80] sm:$0xff] %vm311, %v2139
        %2172 = vst.msk [vmem:[%s231 + $0x88] sm:$0xff] %vm311, %v2140
        %2173 = vst.msk [vmem:[%s231 + $0x90] sm:$0xff] %vm311, %v2141
        %2174 = vst.msk [vmem:[%s231 + $0x98] sm:$0xff] %vm311, %v2142
        %2175 = vst.msk [vmem:[%s231 + $0xa0] sm:$0xff] %vm311, %v2143
        %2176 = vst.msk [vmem:[%s231 + $0xa8] sm:$0xff] %vm311, %v2144
        %2177 = vst.msk [vmem:[%s231 + $0xb0] sm:$0xff] %vm311, %v2145
        %2178 = vst.msk [vmem:[%s231 + $0xb8] sm:$0xff] %vm311, %v2146
        %2179 = vst.msk [vmem:[%s231 + $0xc0] sm:$0xff] %vm311, %v2147
        %2180 = vst.msk [vmem:[%s231 + $0xc8] sm:$0xff] %vm311, %v2148
        %2181 = vst.msk [vmem:[%s231 + $0xd0] sm:$0xff] %vm311, %v2149
        %2182 = vst.msk [vmem:[%s231 + $0xd8] sm:$0xff] %vm311, %v2150
        %2183 = vst.msk [vmem:[%s231 + $0xe0] sm:$0xff] %vm311, %v2151
        %2184 = vst.msk [vmem:[%s231 + $0xe8] sm:$0xff] %vm311, %v2152
        %2185 = vst.msk [vmem:[%s231 + $0xf0] sm:$0xff] %vm311, %v2153
        %2186 = vst.msk [vmem:[%s231 + $0xf8] sm:$0xff] %vm311, %v2154
        %s2187 = sand.u32 %s151, 1
        %s2188 = scalar_lea.sflag [#allocation3], %s2187
        %s2189 = sand.u32 %s151, 1
        %s2190 = smul.addr %s2189, 256
        %s2191 = scalar_lea.vmem [#allocation2], %s2190
        // Predicated region
        $region41: #{tpu_custom_call.1} parent=39 // pred_check
          %p2192 = pneg %p161
        $region42: #{tpu_custom_call.1} parent=39 // pred_check_branch
          %2194 = sbr.rel (%p2192) target = $region44
        $region43: #{tpu_custom_call.1} parent=39 // pred_region
          %s2195 = smul.u32 16, %s24
          %s2197 = ssub.s32 4096, 4096
          %2198 = vsyncadd %s2188, %s2197
          %s2199 = smul.addr %s2195, 2
          %s2200 = smul.addr %s23, 32
          %s2201 = sadd.s32 %s2199, %s2200
          %s2202 = smul.addr %s2201, 128
          %s2203 = scalar_lea.hbm %s5, %s2202
          %s2204 = sshll.u32 %s2191, 4
          %s2205 = int_to_ptr.vmem [resolvable:$true] %s2204
          %2210 = dma.vmem_to_hbm [thread:$0]  %s2205, 4096, %s2203, %s2188, 128, 128, 8
        $region44: #{tpu_custom_call.1} parent=39 // pred_fallthru
          _
      $region40: #{tpu_custom_call.1} parent=5 // pred_fallthru
        _
      %p2211 = scmp.le.s32.totalorder 2, %s14
      // Predicated region
      $region45: #{tpu_custom_call.1} parent=5 // pred_check
        %p2212 = pneg %p2211
      $region46: #{tpu_custom_call.1} parent=5 // pred_check_branch
        %2214 = sbr.rel (%p2212) target = $region48
      $region47: #{tpu_custom_call.1} parent=5 // pred_region
        %s2215 = ssub.s32 %s14, 2
        // Predicated region
        $region49: #{tpu_custom_call.1} parent=47 // pred_check
          %p2216 = pneg %p167
        $region50: #{tpu_custom_call.1} parent=47 // pred_check_branch
          %2218 = sbr.rel (%p2216) target = $region52
        $region51: #{tpu_custom_call.1} parent=47 // pred_region
          %s2219 = sand.u32 %s152, 1
          %s2220 = scalar_lea.sflag [#allocation3], %s2219
          %s2221 = sand.u32 %s152, 1
          %s2222 = smul.addr %s2221, 256
          %s2223 = scalar_lea.vmem [#allocation2], %s2222
          %2224 = dma.done %s2220, 4096
        $region52: #{tpu_custom_call.1} parent=47 // pred_fallthru
          _
      $region48: #{tpu_custom_call.1} parent=5 // pred_fallthru
        _
    $region6: #{tpu_custom_call.1} parent=1 // loop_footer
      %s18 = sadd.s32 1, %s14
    $region7: #{tpu_custom_call.1} parent=1 // loop_footer_branch
      %13 = sbr.rel target = $region3
    $region8: #{tpu_custom_call.1} parent=1 // loop_exit
      _
    %2225 = vsyncpa [#allocation3], 1
    %s2226 = scalar_lea.sflag [#allocation3], 1
    %2227 = vsyncpa %s2226, 1

</llo_original>
